<compile_context>
chip_gen: v7x
topology: tpu7x:2x2x1
jax: 0.10.0
libtpu: 0.0.40
codegen_flags: <defaults>
</compile_context>

<pallas_src>
import functools

import jax
import jax.numpy as jnp
from jax.experimental import pallas as pl
from jax.experimental.pallas import tpu as pltpu


def hard_routing_kernel(x_ref, w0_ref, b0_ref, w1r_ref, b1_ref,
                        wm_ref, bm_ref, a2_ref, b2_ref,
                        wf0_ref, wf1_ref, bf1_ref,
                        gum_ref, out_ref, *, inv_tau):
    TB, N, C = x_ref.shape
    x = x_ref[...]                                   # (TB, N, C)
    x2 = x.reshape(TB * N, C)                        # fuse batch+seq for the MXU

    # --- AttFlat.mlp: Linear(C->C) + ReLU (+dropout=identity at eval) ---
    # TODO(synk): dropout (p=0.1) inside FC is treated as identity (eval mode).
    h = jnp.maximum(
        jnp.dot(x2, w0_ref[...], preferred_element_type=jnp.float32) + b0_ref[...],
        0.0)                                         # (TB*N, C)
    h = h.reshape(TB, N, C)                          # sublane re-fold only, no relayout

    # C->1 score projection as a VPU multiply + lane reduce -> lane-dense (TB, N).
    att = jnp.sum(h * w1r_ref[...], axis=-1) + b1_ref[...]          # (TB, N)

    # --- make_mask: sequence positions whose |features| sum to zero ---
    mask = jnp.sum(jnp.abs(x), axis=-1) == 0.0                       # (TB, N)
    att = jnp.where(mask, -1e9, att)

    # --- softmax over the sequence dimension (lane axis) ---
    att = att - jnp.max(att, axis=-1, keepdims=True)
    e = jnp.exp(att)
    att = e / jnp.sum(e, axis=-1, keepdims=True)                     # (TB, N)

    # --- attention-weighted pooling over the sequence ---
    x_att = jnp.sum(att[:, :, None] * x, axis=1)                     # (TB, C)

    # --- linear_merge + custom LayerNorm (unbiased std, eps on std, like torch) ---
    x_m = jnp.dot(x_att, wm_ref[...], preferred_element_type=jnp.float32) + bm_ref[...]
    mean = jnp.mean(x_m, axis=-1, keepdims=True)
    var = jnp.sum((x_m - mean) ** 2, axis=-1, keepdims=True) / (C - 1)
    x_n = a2_ref[...] * (x_m - mean) / (jnp.sqrt(var) + 1e-6) + b2_ref[...]

    # --- routing MLP: Linear(C -> C//r, no bias) + ReLU, Linear(C//r -> out) ---
    h2 = jnp.maximum(
        jnp.dot(x_n, wf0_ref[...], preferred_element_type=jnp.float32), 0.0)
    logits = jnp.dot(h2, wf1_ref[...], preferred_element_type=jnp.float32) + bf1_ref[...]

    # --- gumbel softmax.  Reference: softmax((log_softmax(logits)+g)/tau);
    # log_softmax only subtracts a per-row constant, to which the final softmax
    # is invariant, so compute softmax((logits+g)/tau) directly.  1/tau is a
    # trace-time constant (no SMEM operand). ---
    z = (logits + gum_ref[...]) * inv_tau
    z = z - jnp.max(z, axis=-1, keepdims=True)
    ez = jnp.exp(z)
    out_ref[...] = ez / jnp.sum(ez, axis=-1, keepdims=True)


def hard_routing_block(x, params, gumbels, tau, *, tile_b=None):
    """x: (B, N, C) f32; gumbels: (B, out) f32; tau: python float.

    tile_b: examples per grid step.  Default = whole batch (single grid step),
    which is the right choice on all TPU generations at small/medium B since
    the kernel is overhead-bound.  Only tile once B is large enough that the
    (tile_b, N, C) x block would exceed ~0.5-2 MiB; the batch grid axis stays
    "parallel" so it can also shard across cores when per-step work is big.
    """
    B, N, C = x.shape
    out_ch = params['wf1'].shape[1]
    red = params['wf0'].shape[1]
    if tile_b is None:
        tile_b = B
    assert B % tile_b == 0

    w1_row = params['w1'].reshape(1, C)                         # (C,1) -> (1,C)

    def full2(shape):
        return pl.BlockSpec(shape, lambda b: (0, 0))

    in_specs = [
        pl.BlockSpec((tile_b, N, C), lambda b: (b, 0, 0)),      # x (batched block)
        full2((C, C)), full2((1, C)),                           # AttFlat FC
        full2((1, C)), full2((1, 1)),                           # AttFlat score row + bias
        full2((C, C)), full2((1, C)),                           # linear_merge
        full2((1, C)), full2((1, C)),                           # LayerNorm a_2 / b_2
        full2((C, red)), full2((red, out_ch)), full2((1, out_ch)),  # routing MLP
        pl.BlockSpec((tile_b, out_ch), lambda b: (b, 0)),       # gumbel noise (batched)
    ]
    out_specs = pl.BlockSpec((tile_b, out_ch), lambda b: (b, 0))

    kernel = functools.partial(hard_routing_kernel, inv_tau=float(1.0 / tau))

    return pl.pallas_call(
        kernel,
        out_shape=jax.ShapeDtypeStruct((B, out_ch), jnp.float32),
        grid_spec=pltpu.PrefetchScalarGridSpec(
            num_scalar_prefetch=0,
            grid=(B // tile_b,),
            in_specs=in_specs,
            out_specs=out_specs),
        compiler_params=pltpu.CompilerParams(
            dimension_semantics=("parallel",)),
    )(x, params['w0'], params['b0'], w1_row, params['b1'],
      params['wm'], params['bm'], params['a2'], params['b2'],
      params['wf0'], params['wf1'], params['bf1'], gumbels)


def reference(x, p, gumbels, tau):
    """Pure-JAX reference mirroring the PyTorch forward (eval mode)."""
    C = x.shape[-1]
    mask = jnp.sum(jnp.abs(x), axis=-1) == 0.0                       # (B, N)
    h = jax.nn.relu(x @ p['w0'] + p['b0'][0])
    att = h @ p['w1'] + p['b1'][0]                                   # (B, N, 1)
    att = jnp.where(mask[..., None], -1e9, att)
    att = jax.nn.softmax(att, axis=1)
    x_att = jnp.sum(att * x, axis=1)                                 # (B, C)
    x_m = x_att @ p['wm'] + p['bm'][0]
    mean = x_m.mean(-1, keepdims=True)
    std = jnp.sqrt(jnp.sum((x_m - mean) ** 2, -1, keepdims=True) / (C - 1))
    x_n = p['a2'][0] * (x_m - mean) / (std + 1e-6) + p['b2'][0]
    h2 = jax.nn.relu(x_n @ p['wf0'])
    logits = h2 @ p['wf1'] + p['bf1'][0]
    z = (jax.nn.log_softmax(logits, -1) + gumbels) / tau
    return jax.nn.softmax(z, -1)


if __name__ == "__main__":
    B, N, C = 16, 8, 32
    out_channel, reduction = 4, 2
    tau = 0.5

    key = jax.random.PRNGKey(0)
    keys = jax.random.split(key, 12)

    x = jax.random.normal(keys[0], (B, N, C), jnp.float32)
    # Zero out last sequence position of each batch so the mask path is exercised.
    x = x.at[:, -1, :].set(0.0)

    scale = 0.1
    params = {
        'w0':  scale * jax.random.normal(keys[1], (C, C), jnp.float32),
        'b0':  scale * jax.random.normal(keys[2], (1, C), jnp.float32),
        'w1':  scale * jax.random.normal(keys[3], (C, 1), jnp.float32),
        'b1':  scale * jax.random.normal(keys[4], (1, 1), jnp.float32),
        'wm':  scale * jax.random.normal(keys[5], (C, C), jnp.float32),
        'bm':  scale * jax.random.normal(keys[6], (1, C), jnp.float32),
        'a2':  jnp.ones((1, C), jnp.float32),
        'b2':  jnp.zeros((1, C), jnp.float32),
        'wf0': scale * jax.random.normal(keys[7], (C, C // reduction), jnp.float32),
        'wf1': scale * jax.random.normal(keys[8], (C // reduction, out_channel), jnp.float32),
        'bf1': scale * jax.random.normal(keys[9], (1, out_channel), jnp.float32),
    }

    # Gumbel noise: -log(Exponential(1)) == standard Gumbel samples.
    gumbels = jax.random.gumbel(keys[10], (B, out_channel), jnp.float32)

    # Default tile_b = B -> single grid step, whole batch per call.
    alpha = hard_routing_block(x, params, gumbels, tau)
    alpha = jax.block_until_ready(alpha)

    alpha_ref = reference(x, params, gumbels, tau)
    assert alpha.shape == (B, out_channel)
    assert jnp.allclose(alpha, alpha_ref, rtol=1e-4, atol=1e-5), (alpha, alpha_ref)

    print("KERNEL_OK")
</pallas_src>

<mosaic_0001>
module attributes {stable_mosaic.version = 11 : i64} {
  func.func @hard_routing_kernel(%arg0: i32, %arg1: memref<16x8x32xf32, #tpu.memory_space<vmem>>, %arg2: memref<32x32xf32, #tpu.memory_space<vmem>>, %arg3: memref<1x32xf32, #tpu.memory_space<vmem>>, %arg4: memref<1x32xf32, #tpu.memory_space<vmem>>, %arg5: memref<1x1xf32, #tpu.memory_space<vmem>>, %arg6: memref<32x32xf32, #tpu.memory_space<vmem>>, %arg7: memref<1x32xf32, #tpu.memory_space<vmem>>, %arg8: memref<1x32xf32, #tpu.memory_space<vmem>>, %arg9: memref<1x32xf32, #tpu.memory_space<vmem>>, %arg10: memref<32x16xf32, #tpu.memory_space<vmem>>, %arg11: memref<16x4xf32, #tpu.memory_space<vmem>>, %arg12: memref<1x4xf32, #tpu.memory_space<vmem>>, %arg13: memref<16x4xf32, #tpu.memory_space<vmem>>, %arg14: memref<16x4xf32, #tpu.memory_space<vmem>>) attributes {dimension_semantics = [#tpu.dimension_semantics<parallel>], iteration_bounds = array<i64: 1>, scalar_prefetch = 0 : i64, scratch_operands = 0 : i64, tpu.core_type = #tpu.core_type<tc>, window_params = [{transform_indices = @transform_0, window_bounds = array<i64: 16, 8, 32>}, {pipeline_mode = #tpu.pipeline_mode<synchronous>, transform_indices = @transform_1, window_bounds = array<i64: 32, 32>}, {pipeline_mode = #tpu.pipeline_mode<synchronous>, transform_indices = @transform_2, window_bounds = array<i64: 1, 32>}, {pipeline_mode = #tpu.pipeline_mode<synchronous>, transform_indices = @transform_3, window_bounds = array<i64: 1, 32>}, {pipeline_mode = #tpu.pipeline_mode<synchronous>, transform_indices = @transform_4, window_bounds = array<i64: 1, 1>}, {pipeline_mode = #tpu.pipeline_mode<synchronous>, transform_indices = @transform_5, window_bounds = array<i64: 32, 32>}, {pipeline_mode = #tpu.pipeline_mode<synchronous>, transform_indices = @transform_6, window_bounds = array<i64: 1, 32>}, {pipeline_mode = #tpu.pipeline_mode<synchronous>, transform_indices = @transform_7, window_bounds = array<i64: 1, 32>}, {pipeline_mode = #tpu.pipeline_mode<synchronous>, transform_indices = @transform_8, window_bounds = array<i64: 1, 32>}, {pipeline_mode = #tpu.pipeline_mode<synchronous>, transform_indices = @transform_9, window_bounds = array<i64: 32, 16>}, {pipeline_mode = #tpu.pipeline_mode<synchronous>, transform_indices = @transform_10, window_bounds = array<i64: 16, 4>}, {pipeline_mode = #tpu.pipeline_mode<synchronous>, transform_indices = @transform_11, window_bounds = array<i64: 1, 4>}, {transform_indices = @transform_12, window_bounds = array<i64: 16, 4>}, {transform_indices = @transform_13, window_bounds = array<i64: 16, 4>}]} {
    %c0 = arith.constant 0 : index
    %c0_0 = arith.constant 0 : index
    %c0_1 = arith.constant 0 : index
    %0 = vector.load %arg1[%c0, %c0_0, %c0_1] : memref<16x8x32xf32, #tpu.memory_space<vmem>>, vector<16x8x32xf32>
    %1 = vector.shape_cast %0 : vector<16x8x32xf32> to vector<128x32xf32>
    %c0_2 = arith.constant 0 : index
    %c0_3 = arith.constant 0 : index
    %2 = vector.load %arg2[%c0_2, %c0_3] : memref<32x32xf32, #tpu.memory_space<vmem>>, vector<32x32xf32>
    %cst = arith.constant dense<0.000000e+00> : vector<128x32xf32>
    %3 = tpu.matmul %1, %2, %cst {dimension_numbers = #tpu.dot_dimension_numbers<[1], [0], [0], [1], [0, 0, 1, 1], [], []>} : vector<128x32xf32>, vector<32x32xf32>, vector<128x32xf32> -> vector<128x32xf32>
    %c0_4 = arith.constant 0 : index
    %c0_5 = arith.constant 0 : index
    %4 = vector.load %arg3[%c0_4, %c0_5] : memref<1x32xf32, #tpu.memory_space<vmem>>, vector<1x32xf32>
    %5 = vector.broadcast %4 : vector<1x32xf32> to vector<128x32xf32>
    %6 = arith.addf %3, %5 : vector<128x32xf32>
    %cst_6 = arith.constant 0.000000e+00 : f32
    %7 = vector.broadcast %cst_6 : f32 to vector<128x32xf32>
    %8 = arith.maximumf %6, %7 : vector<128x32xf32>
    %9 = vector.shape_cast %8 : vector<128x32xf32> to vector<16x8x32xf32>
    %c0_7 = arith.constant 0 : index
    %c0_8 = arith.constant 0 : index
    %10 = vector.load %arg4[%c0_7, %c0_8] : memref<1x32xf32, #tpu.memory_space<vmem>>, vector<1x32xf32>
    %11 = vector.shape_cast %10 : vector<1x32xf32> to vector<1x1x32xf32>
    %12 = vector.broadcast %11 : vector<1x1x32xf32> to vector<16x8x32xf32>
    %13 = arith.mulf %9, %12 : vector<16x8x32xf32>
    %cst_9 = arith.constant dense<0.000000e+00> : vector<16x8xf32>
    %14 = vector.multi_reduction <add>, %13, %cst_9 [2] : vector<16x8x32xf32> to vector<16x8xf32>
    %c0_10 = arith.constant 0 : index
    %c0_11 = arith.constant 0 : index
    %15 = vector.load %arg5[%c0_10, %c0_11] : memref<1x1xf32, #tpu.memory_space<vmem>>, vector<1x1xf32>
    %16 = vector.broadcast %15 : vector<1x1xf32> to vector<16x8xf32>
    %17 = arith.addf %14, %16 : vector<16x8xf32>
    %18 = math.absf %0 : vector<16x8x32xf32>
    %cst_12 = arith.constant dense<0.000000e+00> : vector<16x8xf32>
    %19 = vector.multi_reduction <add>, %18, %cst_12 [2] : vector<16x8x32xf32> to vector<16x8xf32>
    %cst_13 = arith.constant 0.000000e+00 : f32
    %20 = vector.broadcast %cst_13 : f32 to vector<16x8xf32>
    %21 = arith.cmpf oeq, %19, %20 : vector<16x8xf32>
    %cst_14 = arith.constant -1.000000e+09 : f32
    %22 = vector.broadcast %cst_14 : f32 to vector<16x8xf32>
    %23 = arith.select %21, %22, %17 : vector<16x8xi1>, vector<16x8xf32>
    %cst_15 = arith.constant dense<0xFF800000> : vector<16xf32>
    %24 = vector.multi_reduction <maximumf>, %23, %cst_15 [1] : vector<16x8xf32> to vector<16xf32>
    %25 = vector.shape_cast %24 : vector<16xf32> to vector<16x1xf32>
    %26 = vector.broadcast %25 : vector<16x1xf32> to vector<16x8xf32>
    %27 = arith.subf %23, %26 : vector<16x8xf32>
    %28 = math.exp %27 : vector<16x8xf32>
    %cst_16 = arith.constant dense<0.000000e+00> : vector<16xf32>
    %29 = vector.multi_reduction <add>, %28, %cst_16 [1] : vector<16x8xf32> to vector<16xf32>
    %30 = vector.shape_cast %29 : vector<16xf32> to vector<16x1xf32>
    %31 = vector.broadcast %30 : vector<16x1xf32> to vector<16x8xf32>
    %32 = arith.divf %28, %31 : vector<16x8xf32>
    %33 = vector.shape_cast %32 : vector<16x8xf32> to vector<16x8x1xf32>
    %34 = vector.broadcast %33 : vector<16x8x1xf32> to vector<16x8x32xf32>
    %35 = arith.mulf %34, %0 : vector<16x8x32xf32>
    %cst_17 = arith.constant dense<0.000000e+00> : vector<16x32xf32>
    %36 = vector.multi_reduction <add>, %35, %cst_17 [1] : vector<16x8x32xf32> to vector<16x32xf32>
    %c0_18 = arith.constant 0 : index
    %c0_19 = arith.constant 0 : index
    %37 = vector.load %arg6[%c0_18, %c0_19] : memref<32x32xf32, #tpu.memory_space<vmem>>, vector<32x32xf32>
    %cst_20 = arith.constant dense<0.000000e+00> : vector<16x32xf32>
    %38 = tpu.matmul %36, %37, %cst_20 {dimension_numbers = #tpu.dot_dimension_numbers<[1], [0], [0], [1], [0, 0, 1, 1], [], []>} : vector<16x32xf32>, vector<32x32xf32>, vector<16x32xf32> -> vector<16x32xf32>
    %c0_21 = arith.constant 0 : index
    %c0_22 = arith.constant 0 : index
    %39 = vector.load %arg7[%c0_21, %c0_22] : memref<1x32xf32, #tpu.memory_space<vmem>>, vector<1x32xf32>
    %40 = vector.broadcast %39 : vector<1x32xf32> to vector<16x32xf32>
    %41 = arith.addf %38, %40 : vector<16x32xf32>
    %cst_23 = arith.constant dense<0.000000e+00> : vector<16xf32>
    %42 = vector.multi_reduction <add>, %41, %cst_23 [1] : vector<16x32xf32> to vector<16xf32>
    %43 = vector.shape_cast %42 : vector<16xf32> to vector<16x1xf32>
    %cst_24 = arith.constant 3.200000e+01 : f32
    %44 = vector.broadcast %cst_24 : f32 to vector<16x1xf32>
    %45 = arith.divf %43, %44 : vector<16x1xf32>
    %46 = vector.broadcast %45 : vector<16x1xf32> to vector<16x32xf32>
    %47 = arith.subf %41, %46 : vector<16x32xf32>
    %48 = arith.mulf %47, %47 : vector<16x32xf32>
    %cst_25 = arith.constant dense<0.000000e+00> : vector<16xf32>
    %49 = vector.multi_reduction <add>, %48, %cst_25 [1] : vector<16x32xf32> to vector<16xf32>
    %50 = vector.shape_cast %49 : vector<16xf32> to vector<16x1xf32>
    %cst_26 = arith.constant 3.100000e+01 : f32
    %51 = vector.broadcast %cst_26 : f32 to vector<16x1xf32>
    %52 = arith.divf %50, %51 : vector<16x1xf32>
    %c0_27 = arith.constant 0 : index
    %c0_28 = arith.constant 0 : index
    %53 = vector.load %arg8[%c0_27, %c0_28] : memref<1x32xf32, #tpu.memory_space<vmem>>, vector<1x32xf32>
    %54 = vector.broadcast %45 : vector<16x1xf32> to vector<16x32xf32>
    %55 = arith.subf %41, %54 : vector<16x32xf32>
    %56 = vector.broadcast %53 : vector<1x32xf32> to vector<16x32xf32>
    %57 = arith.mulf %56, %55 : vector<16x32xf32>
    %58 = math.sqrt %52 : vector<16x1xf32>
    %cst_29 = arith.constant 9.99999997E-7 : f32
    %59 = vector.broadcast %cst_29 : f32 to vector<16x1xf32>
    %60 = arith.addf %58, %59 : vector<16x1xf32>
    %61 = vector.broadcast %60 : vector<16x1xf32> to vector<16x32xf32>
    %62 = arith.divf %57, %61 : vector<16x32xf32>
    %c0_30 = arith.constant 0 : index
    %c0_31 = arith.constant 0 : index
    %63 = vector.load %arg9[%c0_30, %c0_31] : memref<1x32xf32, #tpu.memory_space<vmem>>, vector<1x32xf32>
    %64 = vector.broadcast %63 : vector<1x32xf32> to vector<16x32xf32>
    %65 = arith.addf %62, %64 : vector<16x32xf32>
    %c0_32 = arith.constant 0 : index
    %c0_33 = arith.constant 0 : index
    %66 = vector.load %arg10[%c0_32, %c0_33] : memref<32x16xf32, #tpu.memory_space<vmem>>, vector<32x16xf32>
    %cst_34 = arith.constant dense<0.000000e+00> : vector<16x16xf32>
    %67 = tpu.matmul %65, %66, %cst_34 {dimension_numbers = #tpu.dot_dimension_numbers<[1], [0], [0], [1], [0, 0, 1, 1], [], []>} : vector<16x32xf32>, vector<32x16xf32>, vector<16x16xf32> -> vector<16x16xf32>
    %cst_35 = arith.constant 0.000000e+00 : f32
    %68 = vector.broadcast %cst_35 : f32 to vector<16x16xf32>
    %69 = arith.maximumf %67, %68 : vector<16x16xf32>
    %c0_36 = arith.constant 0 : index
    %c0_37 = arith.constant 0 : index
    %70 = vector.load %arg11[%c0_36, %c0_37] : memref<16x4xf32, #tpu.memory_space<vmem>>, vector<16x4xf32>
    %cst_38 = arith.constant dense<0.000000e+00> : vector<16x4xf32>
    %71 = tpu.matmul %69, %70, %cst_38 {dimension_numbers = #tpu.dot_dimension_numbers<[1], [0], [0], [1], [0, 0, 1, 1], [], []>} : vector<16x16xf32>, vector<16x4xf32>, vector<16x4xf32> -> vector<16x4xf32>
    %c0_39 = arith.constant 0 : index
    %c0_40 = arith.constant 0 : index
    %72 = vector.load %arg12[%c0_39, %c0_40] : memref<1x4xf32, #tpu.memory_space<vmem>>, vector<1x4xf32>
    %73 = vector.broadcast %72 : vector<1x4xf32> to vector<16x4xf32>
    %74 = arith.addf %71, %73 : vector<16x4xf32>
    %c0_41 = arith.constant 0 : index
    %c0_42 = arith.constant 0 : index
    %75 = vector.load %arg13[%c0_41, %c0_42] : memref<16x4xf32, #tpu.memory_space<vmem>>, vector<16x4xf32>
    %76 = arith.addf %74, %75 : vector<16x4xf32>
    %cst_43 = arith.constant 2.000000e+00 : f32
    %77 = vector.broadcast %cst_43 : f32 to vector<16x4xf32>
    %78 = arith.mulf %76, %77 : vector<16x4xf32>
    %cst_44 = arith.constant dense<0xFF800000> : vector<16xf32>
    %79 = vector.multi_reduction <maximumf>, %78, %cst_44 [1] : vector<16x4xf32> to vector<16xf32>
    %80 = vector.shape_cast %79 : vector<16xf32> to vector<16x1xf32>
    %81 = vector.broadcast %80 : vector<16x1xf32> to vector<16x4xf32>
    %82 = arith.subf %78, %81 : vector<16x4xf32>
    %83 = math.exp %82 : vector<16x4xf32>
    %cst_45 = arith.constant dense<0.000000e+00> : vector<16xf32>
    %84 = vector.multi_reduction <add>, %83, %cst_45 [1] : vector<16x4xf32> to vector<16xf32>
    %85 = vector.shape_cast %84 : vector<16xf32> to vector<16x1xf32>
    %86 = vector.broadcast %85 : vector<16x1xf32> to vector<16x4xf32>
    %87 = arith.divf %83, %86 : vector<16x4xf32>
    %c0_46 = arith.constant 0 : index
    %c0_47 = arith.constant 0 : index
    %88 = vector.load %arg14[%c0_46, %c0_47] : memref<16x4xf32, #tpu.memory_space<vmem>>, vector<16x4xf32>
    tpu.vector_store %arg14[%c0_46, %c0_47], %87 {strides = array<i32>} : memref<16x4xf32, #tpu.memory_space<vmem>>, vector<16x4xf32>,
    return
  }
  func.func @transform_0(%arg0: i32) -> (i32, i32, i32) {
    %c0_i32 = arith.constant 0 : i32
    %c0_i32_0 = arith.constant 0 : i32
    %c0_i32_1 = arith.constant 0 : i32
    return %arg0, %c0_i32, %c0_i32_0 : i32, i32, i32
  }
  func.func @transform_1(%arg0: i32) -> (i32, i32) {
    %c0_i32 = arith.constant 0 : i32
    %c0_i32_0 = arith.constant 0 : i32
    %c0_i32_1 = arith.constant 0 : i32
    return %c0_i32, %c0_i32_0 : i32, i32
  }
  func.func @transform_2(%arg0: i32) -> (i32, i32) {
    %c0_i32 = arith.constant 0 : i32
    %c0_i32_0 = arith.constant 0 : i32
    %c0_i32_1 = arith.constant 0 : i32
    return %c0_i32, %c0_i32_0 : i32, i32
  }
  func.func @transform_3(%arg0: i32) -> (i32, i32) {
    %c0_i32 = arith.constant 0 : i32
    %c0_i32_0 = arith.constant 0 : i32
    %c0_i32_1 = arith.constant 0 : i32
    return %c0_i32, %c0_i32_0 : i32, i32
  }
  func.func @transform_4(%arg0: i32) -> (i32, i32) {
    %c0_i32 = arith.constant 0 : i32
    %c0_i32_0 = arith.constant 0 : i32
    %c0_i32_1 = arith.constant 0 : i32
    return %c0_i32, %c0_i32_0 : i32, i32
  }
  func.func @transform_5(%arg0: i32) -> (i32, i32) {
    %c0_i32 = arith.constant 0 : i32
    %c0_i32_0 = arith.constant 0 : i32
    %c0_i32_1 = arith.constant 0 : i32
    return %c0_i32, %c0_i32_0 : i32, i32
  }
  func.func @transform_6(%arg0: i32) -> (i32, i32) {
    %c0_i32 = arith.constant 0 : i32
    %c0_i32_0 = arith.constant 0 : i32
    %c0_i32_1 = arith.constant 0 : i32
    return %c0_i32, %c0_i32_0 : i32, i32
  }
  func.func @transform_7(%arg0: i32) -> (i32, i32) {
    %c0_i32 = arith.constant 0 : i32
    %c0_i32_0 = arith.constant 0 : i32
    %c0_i32_1 = arith.constant 0 : i32
    return %c0_i32, %c0_i32_0 : i32, i32
  }
  func.func @transform_8(%arg0: i32) -> (i32, i32) {
    %c0_i32 = arith.constant 0 : i32
    %c0_i32_0 = arith.constant 0 : i32
    %c0_i32_1 = arith.constant 0 : i32
    return %c0_i32, %c0_i32_0 : i32, i32
  }
  func.func @transform_9(%arg0: i32) -> (i32, i32) {
    %c0_i32 = arith.constant 0 : i32
    %c0_i32_0 = arith.constant 0 : i32
    %c0_i32_1 = arith.constant 0 : i32
    return %c0_i32, %c0_i32_0 : i32, i32
  }
  func.func @transform_10(%arg0: i32) -> (i32, i32) {
    %c0_i32 = arith.constant 0 : i32
    %c0_i32_0 = arith.constant 0 : i32
    %c0_i32_1 = arith.constant 0 : i32
    return %c0_i32, %c0_i32_0 : i32, i32
  }
  func.func @transform_11(%arg0: i32) -> (i32, i32) {
    %c0_i32 = arith.constant 0 : i32
    %c0_i32_0 = arith.constant 0 : i32
    %c0_i32_1 = arith.constant 0 : i32
    return %c0_i32, %c0_i32_0 : i32, i32
  }
  func.func @transform_12(%arg0: i32) -> (i32, i32) {
    %c0_i32 = arith.constant 0 : i32
    %c0_i32_0 = arith.constant 0 : i32
    return %arg0, %c0_i32 : i32, i32
  }
  func.func @transform_13(%arg0: i32) -> (i32, i32) {
    %c0_i32 = arith.constant 0 : i32
    %c0_i32_0 = arith.constant 0 : i32
    return %arg0, %c0_i32 : i32, i32
  }
}

</mosaic_0001>

<llo_original>
// kernel: tpu_custom_call.1
$region0: #{tpu_custom_call.1}
  #allocation0 [shape = 'u32[]', space=smem, size = 0x4, offset = 0x4, fixed_abs, tag = 'smem constant byte address 0x4 - core index']
  #allocation1 [shape = 'u32[144,128]{1,0:T(1,128)}', space=vmem, size = 0x12000, scoped, tag = 'internal scratch']
  #allocation2 [shape = 'f32[1,1]{1,0:T(1,128)S(1)}', space=vmem, size = 0x200, scoped, tag = 'scoped memory for tpu_custom_call.1']
  %s0 = inlined_call_operand.hbm [shape: f32[16,8,32], index: 0, kind: input, shape index: {}]
  %s1 = inlined_call_operand.vmem [shape: f32[32,32], index: 1, kind: input, shape index: {}]
  %s2 = inlined_call_operand.vmem [shape: f32[1,32], index: 2, kind: input, shape index: {}]
  %s3 = inlined_call_operand.vmem [shape: f32[1,32], index: 3, kind: input, shape index: {}]
  %s4 = inlined_call_operand.<no memory space> [shape: f32[1,1], index: 4, kind: input, shape index: {}]
  %s5 = inlined_call_operand.vmem [shape: f32[32,32], index: 5, kind: input, shape index: {}]
  %s6 = inlined_call_operand.vmem [shape: f32[1,32], index: 6, kind: input, shape index: {}]
  %s7 = inlined_call_operand.vmem [shape: f32[1,32], index: 7, kind: input, shape index: {}]
  %s8 = inlined_call_operand.vmem [shape: f32[1,32], index: 8, kind: input, shape index: {}]
  %s9 = inlined_call_operand.vmem [shape: f32[32,16], index: 9, kind: input, shape index: {}]
  %s10 = inlined_call_operand.vmem [shape: f32[16,4], index: 10, kind: input, shape index: {}]
  %s11 = inlined_call_operand.vmem [shape: f32[1,4], index: 11, kind: input, shape index: {}]
  %s12 = inlined_call_operand.vmem [shape: f32[16,4], index: 12, kind: input, shape index: {}]
  %s13 = inlined_call_operand.vmem [shape: f32[16,4], index: 13, kind: output, shape index: {}]
  %s14 = sld [smem:[#allocation0]]
  $region66: #{tpu_custom_call.1} parent=0
    _
  %s16 = ssub.s32 1, %s14
  %s17 = scalar_select 0, %s16, %s14
  %v18 = vstv %s4
  %19 = vst [vmem:[#allocation2] sm:$0x1] %v18
  $region1: #{tpu_custom_call.1} parent=0
    #allocation3 [shape = 'u8[65536]{0}', space=vmem, size = 0x10000, scoped, tag = 'input window, operand 0, single buffered']
    #allocation4 [shape = 's32[1]{0}', space=sflag, size = 0x4, scoped, tag = 'scoped memory for tpu_custom_call.1']
    %20 = vsyncpa [#allocation4], 0
    // Predicated region
    $region2: #{tpu_custom_call.1} parent=1 // pred_check
      _
    $region3: #{tpu_custom_call.1} parent=1 // pred_check_branch
      %22 = sbr.rel (0) target = $region5
    $region4: #{tpu_custom_call.1} parent=1 // pred_region
      %s24 = ssub.s32 2048, 2048
      %25 = vsyncadd [#allocation4], %s24
      %s26 = sshll.u32 [#allocation3], 4
      %s27 = int_to_ptr.vmem [resolvable:$true] %s26
      %32 = dma.hbm_to_vmem [thread:$0]  %s0, 2048, %s27, [#allocation4], 128, 128, 8
    $region5: #{tpu_custom_call.1} parent=1 // pred_fallthru
      _
    // Predicated region
    $region6: #{tpu_custom_call.1} parent=1 // pred_check
      _
    $region7: #{tpu_custom_call.1} parent=1 // pred_check_branch
      %34 = sbr.rel (0) target = $region9
    $region8: #{tpu_custom_call.1} parent=1 // pred_region
      _
    $region9: #{tpu_custom_call.1} parent=1 // pred_fallthru
      _
    // Predicated region
    $region10: #{tpu_custom_call.1} parent=1 // pred_check
      _
    $region11: #{tpu_custom_call.1} parent=1 // pred_check_branch
      %36 = sbr.rel (0) target = $region13
    $region12: #{tpu_custom_call.1} parent=1 // pred_region
      _
    $region13: #{tpu_custom_call.1} parent=1 // pred_fallthru
      _
    // Predicated region
    $region14: #{tpu_custom_call.1} parent=1 // pred_check
      _
    $region15: #{tpu_custom_call.1} parent=1 // pred_check_branch
      %38 = sbr.rel (0) target = $region17
    $region16: #{tpu_custom_call.1} parent=1 // pred_region
      _
    $region17: #{tpu_custom_call.1} parent=1 // pred_fallthru
      _
    // Predicated region
    $region18: #{tpu_custom_call.1} parent=1 // pred_check
      _
    $region19: #{tpu_custom_call.1} parent=1 // pred_check_branch
      %40 = sbr.rel (0) target = $region21
    $region20: #{tpu_custom_call.1} parent=1 // pred_region
      _
    $region21: #{tpu_custom_call.1} parent=1 // pred_fallthru
      _
    // Predicated region
    $region22: #{tpu_custom_call.1} parent=1 // pred_check
      _
    $region23: #{tpu_custom_call.1} parent=1 // pred_check_branch
      %42 = sbr.rel (0) target = $region25
    $region24: #{tpu_custom_call.1} parent=1 // pred_region
      _
    $region25: #{tpu_custom_call.1} parent=1 // pred_fallthru
      _
    // Predicated region
    $region26: #{tpu_custom_call.1} parent=1 // pred_check
      _
    $region27: #{tpu_custom_call.1} parent=1 // pred_check_branch
      %44 = sbr.rel (0) target = $region29
    $region28: #{tpu_custom_call.1} parent=1 // pred_region
      _
    $region29: #{tpu_custom_call.1} parent=1 // pred_fallthru
      _
    // Predicated region
    $region30: #{tpu_custom_call.1} parent=1 // pred_check
      _
    $region31: #{tpu_custom_call.1} parent=1 // pred_check_branch
      %46 = sbr.rel (0) target = $region33
    $region32: #{tpu_custom_call.1} parent=1 // pred_region
      _
    $region33: #{tpu_custom_call.1} parent=1 // pred_fallthru
      _
    // Predicated region
    $region34: #{tpu_custom_call.1} parent=1 // pred_check
      _
    $region35: #{tpu_custom_call.1} parent=1 // pred_check_branch
      %48 = sbr.rel (0) target = $region37
    $region36: #{tpu_custom_call.1} parent=1 // pred_region
      _
    $region37: #{tpu_custom_call.1} parent=1 // pred_fallthru
      _
    // Predicated region
    $region38: #{tpu_custom_call.1} parent=1 // pred_check
      _
    $region39: #{tpu_custom_call.1} parent=1 // pred_check_branch
      %50 = sbr.rel (0) target = $region41
    $region40: #{tpu_custom_call.1} parent=1 // pred_region
      _
    $region41: #{tpu_custom_call.1} parent=1 // pred_fallthru
      _
    // Predicated region
    $region42: #{tpu_custom_call.1} parent=1 // pred_check
      _
    $region43: #{tpu_custom_call.1} parent=1 // pred_check_branch
      %52 = sbr.rel (0) target = $region45
    $region44: #{tpu_custom_call.1} parent=1 // pred_region
      _
    $region45: #{tpu_custom_call.1} parent=1 // pred_fallthru
      _
    // Predicated region
    $region46: #{tpu_custom_call.1} parent=1 // pred_check
      _
    $region47: #{tpu_custom_call.1} parent=1 // pred_check_branch
      %54 = sbr.rel (0) target = $region49
    $region48: #{tpu_custom_call.1} parent=1 // pred_region
      _
    $region49: #{tpu_custom_call.1} parent=1 // pred_fallthru
      _
    // Predicated region
    $region50: #{tpu_custom_call.1} parent=1 // pred_check
      _
    $region51: #{tpu_custom_call.1} parent=1 // pred_check_branch
      %56 = sbr.rel (0) target = $region53
    $region52: #{tpu_custom_call.1} parent=1 // pred_region
      _
    $region53: #{tpu_custom_call.1} parent=1 // pred_fallthru
      _
    // Predicated region
    $region54: #{tpu_custom_call.1} parent=1 // pred_check
      _
    $region55: #{tpu_custom_call.1} parent=1 // pred_check_branch
      %58 = sbr.rel (0) target = $region57
    $region56: #{tpu_custom_call.1} parent=1 // pred_region
      %59 = dma.done [#allocation4], 2048
    $region57: #{tpu_custom_call.1} parent=1 // pred_fallthru
      _
    %v60 = vld [vmem:[#allocation3] sm:$0xff]
    %v61 = vld [vmem:[#allocation3 + $0x8] sm:$0xff]
    %v62 = vld [vmem:[#allocation3 + $0x10] sm:$0xff]
    %v63 = vld [vmem:[#allocation3 + $0x18] sm:$0xff]
    %v64 = vld [vmem:[#allocation3 + $0x20] sm:$0xff]
    %v65 = vld [vmem:[#allocation3 + $0x28] sm:$0xff]
    %v66 = vld [vmem:[#allocation3 + $0x30] sm:$0xff]
    %v67 = vld [vmem:[#allocation3 + $0x38] sm:$0xff]
    %v68 = vld [vmem:[#allocation3 + $0x40] sm:$0xff]
    %v69 = vld [vmem:[#allocation3 + $0x48] sm:$0xff]
    %v70 = vld [vmem:[#allocation3 + $0x50] sm:$0xff]
    %v71 = vld [vmem:[#allocation3 + $0x58] sm:$0xff]
    %v72 = vld [vmem:[#allocation3 + $0x60] sm:$0xff]
    %v73 = vld [vmem:[#allocation3 + $0x68] sm:$0xff]
    %v74 = vld [vmem:[#allocation3 + $0x70] sm:$0xff]
    %v75 = vld [vmem:[#allocation3 + $0x78] sm:$0xff]
    %v76 = vld [vmem:[%s1] sm:$0xff]
    %v77 = vld [vmem:[%s1 + $0x8] sm:$0xff]
    %v78 = vld [vmem:[%s1 + $0x10] sm:$0xff]
    %v79 = vld [vmem:[%s1 + $0x18] sm:$0xff]
    %v80 = vld [vmem:[%s2] sm:$0x1]
    %v82 = vlaneseq
    %v83 = vshrl.u32 %v82, 7
    %v84 = vsub.s32 0, %v83
    %v85 = vrot.slane %v80, %v84
    %vm87 = vcmask 261120
    %v89 = vsel %vm87, %v60, 0
    %v92 = vsel %vm87, %v61, 0
    %v95 = vsel %vm87, %v62, 0
    %v98 = vsel %vm87, %v63, 0
    %v101 = vsel %vm87, %v64, 0
    %v104 = vsel %vm87, %v65, 0
    %v107 = vsel %vm87, %v66, 0
    %v110 = vsel %vm87, %v67, 0
    %v113 = vsel %vm87, %v68, 0
    %v116 = vsel %vm87, %v69, 0
    %v119 = vsel %vm87, %v70, 0
    %v122 = vsel %vm87, %v71, 0
    %v125 = vsel %vm87, %v72, 0
    %v128 = vsel %vm87, %v73, 0
    %v131 = vsel %vm87, %v74, 0
    %v134 = vsel %vm87, %v75, 0
    %136 = vmatprep.subr.mxu0 0.0
    %137 = vmatpush1.msra.mxu0 %v76
    %138 = vmatprep.subr.mxu0 0.0
    %139 = vmatpush1.msra.mxu0 %v77
    %140 = vmatprep.subr.mxu0 0.0
    %141 = vmatpush1.msra.mxu0 %v78
    %142 = vmatprep.subr.mxu0 0.0
    %143 = vmatpush1.msra.mxu0 %v79
    %144 = vmatprep.subr.mxu0 0.0
    %145 = vmatpush1.msra.mxu0 0.0
    %146 = vmatprep.subr.mxu0 0.0
    %147 = vmatpush1.msra.mxu0 0.0
    %148 = vmatprep.subr.mxu0 0.0
    %149 = vmatpush1.msra.mxu0 0.0
    %150 = vmatprep.subr.mxu0 0.0
    %151 = vmatpush1.msra.mxu0 0.0
    %152 = vmatprep.subr.mxu0 0.0
    %153 = vmatpush1.msra.mxu0 0.0
    %154 = vmatprep.subr.mxu0 0.0
    %155 = vmatpush1.msra.mxu0 0.0
    %156 = vmatprep.subr.mxu0 0.0
    %157 = vmatpush1.msra.mxu0 0.0
    %158 = vmatprep.subr.mxu0 0.0
    %159 = vmatpush1.msra.mxu0 0.0
    %160 = vmatprep.subr.mxu0 0.0
    %161 = vmatpush1.msra.mxu0 0.0
    %162 = vmatprep.subr.mxu0 0.0
    %163 = vmatpush1.msra.mxu0 0.0
    %164 = vmatprep.subr.mxu0 0.0
    %165 = vmatpush1.msra.mxu0 0.0
    %166 = vmatprep.subr.mxu0 0.0
    %167 = vmatpush1.msra.mxu0 0.0
    %168 = vmatprep.subr.mxu0 0.0
    %169 = vmatpush1.msra.mxu0 0.0
    %170 = vmatprep.subr.mxu0 0.0
    %171 = vmatpush1.msra.mxu0 0.0
    %172 = vmatprep.subr.mxu0 0.0
    %173 = vmatpush1.msra.mxu0 0.0
    %174 = vmatprep.subr.mxu0 0.0
    %175 = vmatpush1.msra.mxu0 0.0
    %176 = vmatprep.subr.mxu0 0.0
    %177 = vmatpush1.msra.mxu0 0.0
    %178 = vmatprep.subr.mxu0 0.0
    %179 = vmatpush1.msra.mxu0 0.0
    %180 = vmatprep.subr.mxu0 0.0
    %181 = vmatpush1.msra.mxu0 0.0
    %182 = vmatprep.subr.mxu0 0.0
    %183 = vmatpush1.msra.mxu0 0.0
    %184 = vmatprep.subr.mxu0 0.0
    %185 = vmatpush1.msra.mxu0 0.0
    %186 = vmatprep.subr.mxu0 0.0
    %187 = vmatpush1.msra.mxu0 0.0
    %188 = vmatprep.subr.mxu0 0.0
    %189 = vmatpush1.msra.mxu0 0.0
    %190 = vmatprep.subr.mxu0 0.0
    %191 = vmatpush1.msra.mxu0 0.0
    %192 = vmatprep.subr.mxu0 0.0
    %193 = vmatpush1.msra.mxu0 0.0
    %194 = vmatprep.subr.mxu0 0.0
    %195 = vmatpush1.msra.mxu0 0.0
    %196 = vmatprep.subr.mxu0 0.0
    %197 = vmatpush1.msra.mxu0 0.0
    %198 = vmatprep.subr.mxu0 0.0
    %199 = vmatpush1.msra.mxu0 0.0
    %200 = vmatprep.mubr.f32.mxu0 0.0
    %201 = vmatmul.mubr.f32.gmra.mrb[0].mxu0 %v89
    %v202 = vpop.f32.mrb[0].mxu0
    %v203 = vadd.f32 %v85, %v202
    %v204 = vpop.f32.mrb[0].mxu0
    %205 = vmatprep.mubr.f32.mxu0 0.0
    %206 = vmatmul.mubr.f32.gmra.mrb[0].mxu0 %v92
    %v207 = vpop.f32.mrb[0].mxu0
    %v208 = vadd.f32 %v85, %v207
    %v209 = vpop.f32.mrb[0].mxu0
    %210 = vmatprep.mubr.f32.mxu0 0.0
    %211 = vmatmul.mubr.f32.gmra.mrb[0].mxu0 %v95
    %v212 = vpop.f32.mrb[0].mxu0
    %v213 = vadd.f32 %v85, %v212
    %v214 = vpop.f32.mrb[0].mxu0
    %215 = vmatprep.mubr.f32.mxu0 0.0
    %216 = vmatmul.mubr.f32.gmra.mrb[0].mxu0 %v98
    %v217 = vpop.f32.mrb[0].mxu0
    %v218 = vadd.f32 %v85, %v217
    %v219 = vpop.f32.mrb[0].mxu0
    %220 = vmatprep.mubr.f32.mxu0 0.0
    %221 = vmatmul.mubr.f32.gmra.mrb[0].mxu0 %v101
    %v222 = vpop.f32.mrb[0].mxu0
    %v223 = vadd.f32 %v85, %v222
    %v224 = vpop.f32.mrb[0].mxu0
    %225 = vmatprep.mubr.f32.mxu0 0.0
    %226 = vmatmul.mubr.f32.gmra.mrb[0].mxu0 %v104
    %v227 = vpop.f32.mrb[0].mxu0
    %v228 = vadd.f32 %v85, %v227
    %v229 = vpop.f32.mrb[0].mxu0
    %230 = vmatprep.mubr.f32.mxu0 0.0
    %231 = vmatmul.mubr.f32.gmra.mrb[0].mxu0 %v107
    %v232 = vpop.f32.mrb[0].mxu0
    %v233 = vadd.f32 %v85, %v232
    %v234 = vpop.f32.mrb[0].mxu0
    %235 = vmatprep.mubr.f32.mxu0 0.0
    %236 = vmatmul.mubr.f32.gmra.mrb[0].mxu0 %v110
    %v237 = vpop.f32.mrb[0].mxu0
    %v238 = vadd.f32 %v85, %v237
    %v239 = vpop.f32.mrb[0].mxu0
    %240 = vmatprep.mubr.f32.mxu0 0.0
    %241 = vmatmul.mubr.f32.gmra.mrb[0].mxu0 %v113
    %v242 = vpop.f32.mrb[0].mxu0
    %v243 = vadd.f32 %v85, %v242
    %v244 = vpop.f32.mrb[0].mxu0
    %245 = vmatprep.mubr.f32.mxu0 0.0
    %246 = vmatmul.mubr.f32.gmra.mrb[0].mxu0 %v116
    %v247 = vpop.f32.mrb[0].mxu0
    %v248 = vadd.f32 %v85, %v247
    %v249 = vpop.f32.mrb[0].mxu0
    %250 = vmatprep.mubr.f32.mxu0 0.0
    %251 = vmatmul.mubr.f32.gmra.mrb[0].mxu0 %v119
    %v252 = vpop.f32.mrb[0].mxu0
    %v253 = vadd.f32 %v85, %v252
    %v254 = vpop.f32.mrb[0].mxu0
    %255 = vmatprep.mubr.f32.mxu0 0.0
    %256 = vmatmul.mubr.f32.gmra.mrb[0].mxu0 %v122
    %v257 = vpop.f32.mrb[0].mxu0
    %v258 = vadd.f32 %v85, %v257
    %v259 = vpop.f32.mrb[0].mxu0
    %260 = vmatprep.mubr.f32.mxu0 0.0
    %261 = vmatmul.mubr.f32.gmra.mrb[0].mxu0 %v125
    %v262 = vpop.f32.mrb[0].mxu0
    %v263 = vadd.f32 %v85, %v262
    %v264 = vpop.f32.mrb[0].mxu0
    %265 = vmatprep.mubr.f32.mxu0 0.0
    %266 = vmatmul.mubr.f32.gmra.mrb[0].mxu0 %v128
    %v267 = vpop.f32.mrb[0].mxu0
    %v268 = vadd.f32 %v85, %v267
    %v269 = vpop.f32.mrb[0].mxu0
    %270 = vmatprep.mubr.f32.mxu0 0.0
    %271 = vmatmul.mubr.f32.gmra.mrb[0].mxu0 %v131
    %v272 = vpop.f32.mrb[0].mxu0
    %v273 = vadd.f32 %v85, %v272
    %v274 = vpop.f32.mrb[0].mxu0
    %275 = vmatprep.mubr.f32.mxu0 0.0
    %276 = vmatmul.mubr.f32.gmra.mrb[0].mxu0 %v134
    %v277 = vpop.f32.mrb[0].mxu0
    %v278 = vadd.f32 %v85, %v277
    %v279 = vpop.f32.mrb[0].mxu0
    %280 = vdwg.mxu0
    %v281 = vmax.f32 %v203, 0.0
    %v282 = vmax.f32 %v208, 0.0
    %v283 = vmax.f32 %v213, 0.0
    %v284 = vmax.f32 %v218, 0.0
    %v285 = vmax.f32 %v223, 0.0
    %v286 = vmax.f32 %v228, 0.0
    %v287 = vmax.f32 %v233, 0.0
    %v288 = vmax.f32 %v238, 0.0
    %v289 = vmax.f32 %v243, 0.0
    %v290 = vmax.f32 %v248, 0.0
    %v291 = vmax.f32 %v253, 0.0
    %v292 = vmax.f32 %v258, 0.0
    %v293 = vmax.f32 %v263, 0.0
    %v294 = vmax.f32 %v268, 0.0
    %v295 = vmax.f32 %v273, 0.0
    %v296 = vmax.f32 %v278, 0.0
    %v297 = vld [vmem:[%s3] sm:$0x1]
    %v299 = vlaneseq
    %v300 = vshrl.u32 %v299, 7
    %v301 = vsub.s32 0, %v300
    %v302 = vrot.slane %v297, %v301
    %v304 = vmul.f32 %v281, %v302
    %v305 = vmul.f32 %v282, %v302
    %v306 = vmul.f32 %v283, %v302
    %v307 = vmul.f32 %v284, %v302
    %v308 = vmul.f32 %v285, %v302
    %v309 = vmul.f32 %v286, %v302
    %v310 = vmul.f32 %v287, %v302
    %v311 = vmul.f32 %v288, %v302
    %v312 = vmul.f32 %v289, %v302
    %v313 = vmul.f32 %v290, %v302
    %v314 = vmul.f32 %v291, %v302
    %v315 = vmul.f32 %v292, %v302
    %v316 = vmul.f32 %v293, %v302
    %v317 = vmul.f32 %v294, %v302
    %v318 = vmul.f32 %v295, %v302
    %v319 = vmul.f32 %v296, %v302
    %v320 = vsel %vm87, %v304, 0.0
    %321 = vadd.xlane.f32.xlu0 %v320
    %v322 = vpop.xlane.xlu0 %321
    %v323 = vsel %vm87, %v305, 0.0
    %324 = vadd.xlane.f32.xlu0 %v323
    %v325 = vpop.xlane.xlu0 %324
    %v326 = vsel %vm87, %v306, 0.0
    %327 = vadd.xlane.f32.xlu0 %v326
    %v328 = vpop.xlane.xlu0 %327
    %v329 = vsel %vm87, %v307, 0.0
    %330 = vadd.xlane.f32.xlu0 %v329
    %v331 = vpop.xlane.xlu0 %330
    %v332 = vsel %vm87, %v308, 0.0
    %333 = vadd.xlane.f32.xlu0 %v332
    %v334 = vpop.xlane.xlu0 %333
    %v335 = vsel %vm87, %v309, 0.0
    %336 = vadd.xlane.f32.xlu0 %v335
    %v337 = vpop.xlane.xlu0 %336
    %v338 = vsel %vm87, %v310, 0.0
    %339 = vadd.xlane.f32.xlu0 %v338
    %v340 = vpop.xlane.xlu0 %339
    %v341 = vsel %vm87, %v311, 0.0
    %342 = vadd.xlane.f32.xlu0 %v341
    %v343 = vpop.xlane.xlu0 %342
    %v344 = vsel %vm87, %v312, 0.0
    %345 = vadd.xlane.f32.xlu0 %v344
    %v346 = vpop.xlane.xlu0 %345
    %v347 = vsel %vm87, %v313, 0.0
    %348 = vadd.xlane.f32.xlu0 %v347
    %v349 = vpop.xlane.xlu0 %348
    %v350 = vsel %vm87, %v314, 0.0
    %351 = vadd.xlane.f32.xlu0 %v350
    %v352 = vpop.xlane.xlu0 %351
    %v353 = vsel %vm87, %v315, 0.0
    %354 = vadd.xlane.f32.xlu0 %v353
    %v355 = vpop.xlane.xlu0 %354
    %v356 = vsel %vm87, %v316, 0.0
    %357 = vadd.xlane.f32.xlu0 %v356
    %v358 = vpop.xlane.xlu0 %357
    %v359 = vsel %vm87, %v317, 0.0
    %360 = vadd.xlane.f32.xlu0 %v359
    %v361 = vpop.xlane.xlu0 %360
    %v362 = vsel %vm87, %v318, 0.0
    %363 = vadd.xlane.f32.xlu0 %v362
    %v364 = vpop.xlane.xlu0 %363
    %v365 = vsel %vm87, %v319, 0.0
    %366 = vadd.xlane.f32.xlu0 %v365
    %v367 = vpop.xlane.xlu0 %366
    %v368 = vld [vmem:[#allocation2] sm:$0x1]
    %v370 = vlaneseq
    %v371 = vshrl.u32 %v370, 7
    %v372 = vsub.s32 0, %v371
    %v373 = vrot.slane %v368, %v372
    %374 = vset.pattern.permute.xlu0 0
    %375 = vperm.xlu0 %374, %v373
    %v376 = vpop.permute.xlu0 %375
    %v378 = vadd.f32 %v322, %v376
    %v379 = vadd.f32 %v325, %v376
    %v380 = vadd.f32 %v328, %v376
    %v381 = vadd.f32 %v331, %v376
    %v382 = vadd.f32 %v334, %v376
    %v383 = vadd.f32 %v337, %v376
    %v384 = vadd.f32 %v340, %v376
    %v385 = vadd.f32 %v343, %v376
    %v386 = vadd.f32 %v346, %v376
    %v387 = vadd.f32 %v349, %v376
    %v388 = vadd.f32 %v352, %v376
    %v389 = vadd.f32 %v355, %v376
    %v390 = vadd.f32 %v358, %v376
    %v391 = vadd.f32 %v361, %v376
    %v392 = vadd.f32 %v364, %v376
    %v393 = vadd.f32 %v367, %v376
    %v394 = vand.u32 2147483647, %v60
    %v395 = vand.u32 2147483647, %v61
    %v396 = vand.u32 2147483647, %v62
    %v397 = vand.u32 2147483647, %v63
    %v398 = vand.u32 2147483647, %v64
    %v399 = vand.u32 2147483647, %v65
    %v400 = vand.u32 2147483647, %v66
    %v401 = vand.u32 2147483647, %v67
    %v402 = vand.u32 2147483647, %v68
    %v403 = vand.u32 2147483647, %v69
    %v404 = vand.u32 2147483647, %v70
    %v405 = vand.u32 2147483647, %v71
    %v406 = vand.u32 2147483647, %v72
    %v407 = vand.u32 2147483647, %v73
    %v408 = vand.u32 2147483647, %v74
    %v409 = vand.u32 2147483647, %v75
    %v410 = vsel %vm87, %v394, 0.0
    %411 = vadd.xlane.f32.xlu0 %v410
    %v412 = vpop.xlane.xlu0 %411
    %v413 = vsel %vm87, %v395, 0.0
    %414 = vadd.xlane.f32.xlu0 %v413
    %v415 = vpop.xlane.xlu0 %414
    %v416 = vsel %vm87, %v396, 0.0
    %417 = vadd.xlane.f32.xlu0 %v416
    %v418 = vpop.xlane.xlu0 %417
    %v419 = vsel %vm87, %v397, 0.0
    %420 = vadd.xlane.f32.xlu0 %v419
    %v421 = vpop.xlane.xlu0 %420
    %v422 = vsel %vm87, %v398, 0.0
    %423 = vadd.xlane.f32.xlu0 %v422
    %v424 = vpop.xlane.xlu0 %423
    %v425 = vsel %vm87, %v399, 0.0
    %426 = vadd.xlane.f32.xlu0 %v425
    %v427 = vpop.xlane.xlu0 %426
    %v428 = vsel %vm87, %v400, 0.0
    %429 = vadd.xlane.f32.xlu0 %v428
    %v430 = vpop.xlane.xlu0 %429
    %v431 = vsel %vm87, %v401, 0.0
    %432 = vadd.xlane.f32.xlu0 %v431
    %v433 = vpop.xlane.xlu0 %432
    %v434 = vsel %vm87, %v402, 0.0
    %435 = vadd.xlane.f32.xlu0 %v434
    %v436 = vpop.xlane.xlu0 %435
    %v437 = vsel %vm87, %v403, 0.0
    %438 = vadd.xlane.f32.xlu0 %v437
    %v439 = vpop.xlane.xlu0 %438
    %v440 = vsel %vm87, %v404, 0.0
    %441 = vadd.xlane.f32.xlu0 %v440
    %v442 = vpop.xlane.xlu0 %441
    %v443 = vsel %vm87, %v405, 0.0
    %444 = vadd.xlane.f32.xlu0 %v443
    %v445 = vpop.xlane.xlu0 %444
    %v446 = vsel %vm87, %v406, 0.0
    %447 = vadd.xlane.f32.xlu0 %v446
    %v448 = vpop.xlane.xlu0 %447
    %v449 = vsel %vm87, %v407, 0.0
    %450 = vadd.xlane.f32.xlu0 %v449
    %v451 = vpop.xlane.xlu0 %450
    %v452 = vsel %vm87, %v408, 0.0
    %453 = vadd.xlane.f32.xlu0 %v452
    %v454 = vpop.xlane.xlu0 %453
    %v455 = vsel %vm87, %v409, 0.0
    %456 = vadd.xlane.f32.xlu0 %v455
    %v457 = vpop.xlane.xlu0 %456
    %vm458 = vcmp.eq.f32.partialorder %v412, 0.0
    %vm459 = vcmp.eq.f32.partialorder %v415, 0.0
    %vm460 = vcmp.eq.f32.partialorder %v418, 0.0
    %vm461 = vcmp.eq.f32.partialorder %v421, 0.0
    %vm462 = vcmp.eq.f32.partialorder %v424, 0.0
    %vm463 = vcmp.eq.f32.partialorder %v427, 0.0
    %vm464 = vcmp.eq.f32.partialorder %v430, 0.0
    %vm465 = vcmp.eq.f32.partialorder %v433, 0.0
    %vm466 = vcmp.eq.f32.partialorder %v436, 0.0
    %vm467 = vcmp.eq.f32.partialorder %v439, 0.0
    %vm468 = vcmp.eq.f32.partialorder %v442, 0.0
    %vm469 = vcmp.eq.f32.partialorder %v445, 0.0
    %vm470 = vcmp.eq.f32.partialorder %v448, 0.0
    %vm471 = vcmp.eq.f32.partialorder %v451, 0.0
    %vm472 = vcmp.eq.f32.partialorder %v454, 0.0
    %vm473 = vcmp.eq.f32.partialorder %v457, 0.0
    %v474 = vsel %vm458, -1e+09, %v378
    %v475 = vsel %vm459, -1e+09, %v379
    %v476 = vsel %vm460, -1e+09, %v380
    %v477 = vsel %vm461, -1e+09, %v381
    %v478 = vsel %vm462, -1e+09, %v382
    %v479 = vsel %vm463, -1e+09, %v383
    %v480 = vsel %vm464, -1e+09, %v384
    %v481 = vsel %vm465, -1e+09, %v385
    %v482 = vsel %vm466, -1e+09, %v386
    %v483 = vsel %vm467, -1e+09, %v387
    %v484 = vsel %vm468, -1e+09, %v388
    %v485 = vsel %vm469, -1e+09, %v389
    %v486 = vsel %vm470, -1e+09, %v390
    %v487 = vsel %vm471, -1e+09, %v391
    %v488 = vsel %vm472, -1e+09, %v392
    %v489 = vsel %vm473, -1e+09, %v393
    %v506 = vlaneseq
    %v507 = vand.u32 %v506, 127
    %v508 = vlaneseq
    %v509 = vshrl.u32 %v508, 7
    %v510 = vsub.s32 %v507, %v509
    %v511 = vrot.slane %v474, %v510
    %v512 = vlaneseq
    %v513 = vshrl.u32 %v512, 7
    %v514 = vsub.s32 %v507, %v513
    %v515 = vrot.slane %v475, %v514
    %v516 = vlaneseq
    %v517 = vshrl.u32 %v516, 7
    %v518 = vsub.s32 %v507, %v517
    %v519 = vrot.slane %v476, %v518
    %v520 = vlaneseq
    %v521 = vshrl.u32 %v520, 7
    %v522 = vsub.s32 %v507, %v521
    %v523 = vrot.slane %v477, %v522
    %v524 = vlaneseq
    %v525 = vshrl.u32 %v524, 7
    %v526 = vsub.s32 %v507, %v525
    %v527 = vrot.slane %v478, %v526
    %v528 = vlaneseq
    %v529 = vshrl.u32 %v528, 7
    %v530 = vsub.s32 %v507, %v529
    %v531 = vrot.slane %v479, %v530
    %v532 = vlaneseq
    %v533 = vshrl.u32 %v532, 7
    %v534 = vsub.s32 %v507, %v533
    %v535 = vrot.slane %v480, %v534
    %v536 = vlaneseq
    %v537 = vshrl.u32 %v536, 7
    %v538 = vsub.s32 %v507, %v537
    %v539 = vrot.slane %v481, %v538
    %v540 = vlaneseq
    %v541 = vshrl.u32 %v540, 7
    %v542 = vsub.s32 %v507, %v541
    %v543 = vrot.slane %v482, %v542
    %v544 = vlaneseq
    %v545 = vshrl.u32 %v544, 7
    %v546 = vsub.s32 %v507, %v545
    %v547 = vrot.slane %v483, %v546
    %v548 = vlaneseq
    %v549 = vshrl.u32 %v548, 7
    %v550 = vsub.s32 %v507, %v549
    %v551 = vrot.slane %v484, %v550
    %v552 = vlaneseq
    %v553 = vshrl.u32 %v552, 7
    %v554 = vsub.s32 %v507, %v553
    %v555 = vrot.slane %v485, %v554
    %v556 = vlaneseq
    %v557 = vshrl.u32 %v556, 7
    %v558 = vsub.s32 %v507, %v557
    %v559 = vrot.slane %v486, %v558
    %v560 = vlaneseq
    %v561 = vshrl.u32 %v560, 7
    %v562 = vsub.s32 %v507, %v561
    %v563 = vrot.slane %v487, %v562
    %v564 = vlaneseq
    %v565 = vshrl.u32 %v564, 7
    %v566 = vsub.s32 %v507, %v565
    %v567 = vrot.slane %v488, %v566
    %v568 = vlaneseq
    %v569 = vshrl.u32 %v568, 7
    %v570 = vsub.s32 %v507, %v569
    %v571 = vrot.slane %v489, %v570
    %vm572 = vcmask 1041409
    %v573 = vsel %vm572, %v515, %v511
    %vm574 = vcmask 1042434
    %v575 = vsel %vm574, %v519, %v573
    %vm576 = vcmask 1043459
    %v577 = vsel %vm576, %v523, %v575
    %vm578 = vcmask 1044484
    %v579 = vsel %vm578, %v527, %v577
    %vm580 = vcmask 1045509
    %v581 = vsel %vm580, %v531, %v579
    %vm582 = vcmask 1046534
    %v583 = vsel %vm582, %v535, %v581
    %vm584 = vcmask 1047559
    %v585 = vsel %vm584, %v539, %v583
    %v586 = vsel %vm572, %v547, %v543
    %v587 = vsel %vm574, %v551, %v586
    %v588 = vsel %vm576, %v555, %v587
    %v589 = vsel %vm578, %v559, %v588
    %v590 = vsel %vm580, %v563, %v589
    %v591 = vsel %vm582, %v567, %v590
    %v592 = vsel %vm584, %v571, %v591
    %vm595 = vcmask 64512
    %v596 = vsel %vm595, %v585, -inf
    %597 = vmax.xlane.f32.xlu0 %v596
    %v598 = vpop.xlane.xlu0 %597
    %v599 = vsel %vm595, %v592, -inf
    %600 = vmax.xlane.f32.xlu0 %v599
    %v601 = vpop.xlane.xlu0 %600
    %v604 = vlaneseq
    %v605 = vshrl.u32 %v604, 7
    %v606 = vsub.s32 0, %v605
    %v607 = vrot.slane %v598, %v606
    %v608 = vlaneseq
    %v609 = vshrl.u32 %v608, 7
    %v610 = vsub.s32 1, %v609
    %v611 = vrot.slane %v598, %v610
    %v612 = vlaneseq
    %v613 = vshrl.u32 %v612, 7
    %v614 = vsub.s32 2, %v613
    %v615 = vrot.slane %v598, %v614
    %v616 = vlaneseq
    %v617 = vshrl.u32 %v616, 7
    %v618 = vsub.s32 3, %v617
    %v619 = vrot.slane %v598, %v618
    %v620 = vlaneseq
    %v621 = vshrl.u32 %v620, 7
    %v622 = vsub.s32 4, %v621
    %v623 = vrot.slane %v598, %v622
    %v624 = vlaneseq
    %v625 = vshrl.u32 %v624, 7
    %v626 = vsub.s32 5, %v625
    %v627 = vrot.slane %v598, %v626
    %v628 = vlaneseq
    %v629 = vshrl.u32 %v628, 7
    %v630 = vsub.s32 6, %v629
    %v631 = vrot.slane %v598, %v630
    %v632 = vlaneseq
    %v633 = vshrl.u32 %v632, 7
    %v634 = vsub.s32 7, %v633
    %v635 = vrot.slane %v598, %v634
    %v636 = vlaneseq
    %v637 = vshrl.u32 %v636, 7
    %v638 = vsub.s32 0, %v637
    %v639 = vrot.slane %v601, %v638
    %v640 = vlaneseq
    %v641 = vshrl.u32 %v640, 7
    %v642 = vsub.s32 1, %v641
    %v643 = vrot.slane %v601, %v642
    %v644 = vlaneseq
    %v645 = vshrl.u32 %v644, 7
    %v646 = vsub.s32 2, %v645
    %v647 = vrot.slane %v601, %v646
    %v648 = vlaneseq
    %v649 = vshrl.u32 %v648, 7
    %v650 = vsub.s32 3, %v649
    %v651 = vrot.slane %v601, %v650
    %v652 = vlaneseq
    %v653 = vshrl.u32 %v652, 7
    %v654 = vsub.s32 4, %v653
    %v655 = vrot.slane %v601, %v654
    %v656 = vlaneseq
    %v657 = vshrl.u32 %v656, 7
    %v658 = vsub.s32 5, %v657
    %v659 = vrot.slane %v601, %v658
    %v660 = vlaneseq
    %v661 = vshrl.u32 %v660, 7
    %v662 = vsub.s32 6, %v661
    %v663 = vrot.slane %v601, %v662
    %v664 = vlaneseq
    %v665 = vshrl.u32 %v664, 7
    %v666 = vsub.s32 7, %v665
    %v667 = vrot.slane %v601, %v666
    %v684 = vsub.f32 %v474, %v607
    %v685 = vsub.f32 %v475, %v611
    %v686 = vsub.f32 %v476, %v615
    %v687 = vsub.f32 %v477, %v619
    %v688 = vsub.f32 %v478, %v623
    %v689 = vsub.f32 %v479, %v627
    %v690 = vsub.f32 %v480, %v631
    %v691 = vsub.f32 %v481, %v635
    %v692 = vsub.f32 %v482, %v639
    %v693 = vsub.f32 %v483, %v643
    %v694 = vsub.f32 %v484, %v647
    %v695 = vsub.f32 %v485, %v651
    %v696 = vsub.f32 %v486, %v655
    %v697 = vsub.f32 %v487, %v659
    %v698 = vsub.f32 %v488, %v663
    %v699 = vsub.f32 %v489, %v667
    %v700 = vmul.f32 %v684, 1.442695
    %v701 = vpow.pop %v700
    %v702 = vmul.f32 %v685, 1.442695
    %v703 = vpow.pop %v702
    %v704 = vmul.f32 %v686, 1.442695
    %v705 = vpow.pop %v704
    %v706 = vmul.f32 %v687, 1.442695
    %v707 = vpow.pop %v706
    %v708 = vmul.f32 %v688, 1.442695
    %v709 = vpow.pop %v708
    %v710 = vmul.f32 %v689, 1.442695
    %v711 = vpow.pop %v710
    %v712 = vmul.f32 %v690, 1.442695
    %v713 = vpow.pop %v712
    %v714 = vmul.f32 %v691, 1.442695
    %v715 = vpow.pop %v714
    %v716 = vmul.f32 %v692, 1.442695
    %v717 = vpow.pop %v716
    %v718 = vmul.f32 %v693, 1.442695
    %v719 = vpow.pop %v718
    %v720 = vmul.f32 %v694, 1.442695
    %v721 = vpow.pop %v720
    %v722 = vmul.f32 %v695, 1.442695
    %v723 = vpow.pop %v722
    %v724 = vmul.f32 %v696, 1.442695
    %v725 = vpow.pop %v724
    %v726 = vmul.f32 %v697, 1.442695
    %v727 = vpow.pop %v726
    %v728 = vmul.f32 %v698, 1.442695
    %v729 = vpow.pop %v728
    %v730 = vmul.f32 %v699, 1.442695
    %v731 = vpow.pop %v730
    %748 = vset.pattern.permute.xlu0 0
    %749 = vperm.xlu0 %748, %v701
    %v750 = vpop.permute.xlu0 %749
    %751 = vset.pattern.permute.xlu0 0
    %752 = vperm.xlu0 %751, %v703
    %v753 = vpop.permute.xlu0 %752
    %754 = vset.pattern.permute.xlu0 0
    %755 = vperm.xlu0 %754, %v705
    %v756 = vpop.permute.xlu0 %755
    %757 = vset.pattern.permute.xlu0 0
    %758 = vperm.xlu0 %757, %v707
    %v759 = vpop.permute.xlu0 %758
    %760 = vset.pattern.permute.xlu0 0
    %761 = vperm.xlu0 %760, %v709
    %v762 = vpop.permute.xlu0 %761
    %763 = vset.pattern.permute.xlu0 0
    %764 = vperm.xlu0 %763, %v711
    %v765 = vpop.permute.xlu0 %764
    %766 = vset.pattern.permute.xlu0 0
    %767 = vperm.xlu0 %766, %v713
    %v768 = vpop.permute.xlu0 %767
    %769 = vset.pattern.permute.xlu0 0
    %770 = vperm.xlu0 %769, %v715
    %v771 = vpop.permute.xlu0 %770
    %772 = vset.pattern.permute.xlu0 0
    %773 = vperm.xlu0 %772, %v717
    %v774 = vpop.permute.xlu0 %773
    %775 = vset.pattern.permute.xlu0 0
    %776 = vperm.xlu0 %775, %v719
    %v777 = vpop.permute.xlu0 %776
    %778 = vset.pattern.permute.xlu0 0
    %779 = vperm.xlu0 %778, %v721
    %v780 = vpop.permute.xlu0 %779
    %781 = vset.pattern.permute.xlu0 0
    %782 = vperm.xlu0 %781, %v723
    %v783 = vpop.permute.xlu0 %782
    %784 = vset.pattern.permute.xlu0 0
    %785 = vperm.xlu0 %784, %v725
    %v786 = vpop.permute.xlu0 %785
    %787 = vset.pattern.permute.xlu0 0
    %788 = vperm.xlu0 %787, %v727
    %v789 = vpop.permute.xlu0 %788
    %790 = vset.pattern.permute.xlu0 0
    %791 = vperm.xlu0 %790, %v729
    %v792 = vpop.permute.xlu0 %791
    %793 = vset.pattern.permute.xlu0 0
    %794 = vperm.xlu0 %793, %v731
    %v795 = vpop.permute.xlu0 %794
    %v796 = vlaneseq
    %v797 = vshrl.u32 %v796, 7
    %v798 = vsub.s32 %v507, %v797
    %v799 = vrot.slane %v750, %v798
    %v800 = vlaneseq
    %v801 = vshrl.u32 %v800, 7
    %v802 = vsub.s32 %v507, %v801
    %v803 = vrot.slane %v753, %v802
    %v804 = vlaneseq
    %v805 = vshrl.u32 %v804, 7
    %v806 = vsub.s32 %v507, %v805
    %v807 = vrot.slane %v756, %v806
    %v808 = vlaneseq
    %v809 = vshrl.u32 %v808, 7
    %v810 = vsub.s32 %v507, %v809
    %v811 = vrot.slane %v759, %v810
    %v812 = vlaneseq
    %v813 = vshrl.u32 %v812, 7
    %v814 = vsub.s32 %v507, %v813
    %v815 = vrot.slane %v762, %v814
    %v816 = vlaneseq
    %v817 = vshrl.u32 %v816, 7
    %v818 = vsub.s32 %v507, %v817
    %v819 = vrot.slane %v765, %v818
    %v820 = vlaneseq
    %v821 = vshrl.u32 %v820, 7
    %v822 = vsub.s32 %v507, %v821
    %v823 = vrot.slane %v768, %v822
    %v824 = vlaneseq
    %v825 = vshrl.u32 %v824, 7
    %v826 = vsub.s32 %v507, %v825
    %v827 = vrot.slane %v771, %v826
    %v828 = vlaneseq
    %v829 = vshrl.u32 %v828, 7
    %v830 = vsub.s32 %v507, %v829
    %v831 = vrot.slane %v774, %v830
    %v832 = vlaneseq
    %v833 = vshrl.u32 %v832, 7
    %v834 = vsub.s32 %v507, %v833
    %v835 = vrot.slane %v777, %v834
    %v836 = vlaneseq
    %v837 = vshrl.u32 %v836, 7
    %v838 = vsub.s32 %v507, %v837
    %v839 = vrot.slane %v780, %v838
    %v840 = vlaneseq
    %v841 = vshrl.u32 %v840, 7
    %v842 = vsub.s32 %v507, %v841
    %v843 = vrot.slane %v783, %v842
    %v844 = vlaneseq
    %v845 = vshrl.u32 %v844, 7
    %v846 = vsub.s32 %v507, %v845
    %v847 = vrot.slane %v786, %v846
    %v848 = vlaneseq
    %v849 = vshrl.u32 %v848, 7
    %v850 = vsub.s32 %v507, %v849
    %v851 = vrot.slane %v789, %v850
    %v852 = vlaneseq
    %v853 = vshrl.u32 %v852, 7
    %v854 = vsub.s32 %v507, %v853
    %v855 = vrot.slane %v792, %v854
    %v856 = vlaneseq
    %v857 = vshrl.u32 %v856, 7
    %v858 = vsub.s32 %v507, %v857
    %v859 = vrot.slane %v795, %v858
    %v860 = vsel %vm572, %v803, %v799
    %v861 = vsel %vm574, %v807, %v860
    %v862 = vsel %vm576, %v811, %v861
    %v863 = vsel %vm578, %v815, %v862
    %v864 = vsel %vm580, %v819, %v863
    %v865 = vsel %vm582, %v823, %v864
    %v866 = vsel %vm584, %v827, %v865
    %v867 = vsel %vm572, %v835, %v831
    %v868 = vsel %vm574, %v839, %v867
    %v869 = vsel %vm576, %v843, %v868
    %v870 = vsel %vm578, %v847, %v869
    %v871 = vsel %vm580, %v851, %v870
    %v872 = vsel %vm582, %v855, %v871
    %v873 = vsel %vm584, %v859, %v872
    %v876 = vsel %vm595, %v866, 0.0
    %877 = vadd.xlane.f32.xlu0 %v876
    %v878 = vpop.xlane.xlu0 %877
    %v879 = vsel %vm595, %v873, 0.0
    %880 = vadd.xlane.f32.xlu0 %v879
    %v881 = vpop.xlane.xlu0 %880
    %v884 = vlaneseq
    %v885 = vshrl.u32 %v884, 7
    %v886 = vsub.s32 0, %v885
    %v887 = vrot.slane %v878, %v886
    %v888 = vlaneseq
    %v889 = vshrl.u32 %v888, 7
    %v890 = vsub.s32 1, %v889
    %v891 = vrot.slane %v878, %v890
    %v892 = vlaneseq
    %v893 = vshrl.u32 %v892, 7
    %v894 = vsub.s32 2, %v893
    %v895 = vrot.slane %v878, %v894
    %v896 = vlaneseq
    %v897 = vshrl.u32 %v896, 7
    %v898 = vsub.s32 3, %v897
    %v899 = vrot.slane %v878, %v898
    %v900 = vlaneseq
    %v901 = vshrl.u32 %v900, 7
    %v902 = vsub.s32 4, %v901
    %v903 = vrot.slane %v878, %v902
    %v904 = vlaneseq
    %v905 = vshrl.u32 %v904, 7
    %v906 = vsub.s32 5, %v905
    %v907 = vrot.slane %v878, %v906
    %v908 = vlaneseq
    %v909 = vshrl.u32 %v908, 7
    %v910 = vsub.s32 6, %v909
    %v911 = vrot.slane %v878, %v910
    %v912 = vlaneseq
    %v913 = vshrl.u32 %v912, 7
    %v914 = vsub.s32 7, %v913
    %v915 = vrot.slane %v878, %v914
    %v916 = vlaneseq
    %v917 = vshrl.u32 %v916, 7
    %v918 = vsub.s32 0, %v917
    %v919 = vrot.slane %v881, %v918
    %v920 = vlaneseq
    %v921 = vshrl.u32 %v920, 7
    %v922 = vsub.s32 1, %v921
    %v923 = vrot.slane %v881, %v922
    %v924 = vlaneseq
    %v925 = vshrl.u32 %v924, 7
    %v926 = vsub.s32 2, %v925
    %v927 = vrot.slane %v881, %v926
    %v928 = vlaneseq
    %v929 = vshrl.u32 %v928, 7
    %v930 = vsub.s32 3, %v929
    %v931 = vrot.slane %v881, %v930
    %v932 = vlaneseq
    %v933 = vshrl.u32 %v932, 7
    %v934 = vsub.s32 4, %v933
    %v935 = vrot.slane %v881, %v934
    %v936 = vlaneseq
    %v937 = vshrl.u32 %v936, 7
    %v938 = vsub.s32 5, %v937
    %v939 = vrot.slane %v881, %v938
    %v940 = vlaneseq
    %v941 = vshrl.u32 %v940, 7
    %v942 = vsub.s32 6, %v941
    %v943 = vrot.slane %v881, %v942
    %v944 = vlaneseq
    %v945 = vshrl.u32 %v944, 7
    %v946 = vsub.s32 7, %v945
    %v947 = vrot.slane %v881, %v946
    %v964 = vrcp.pop %v887
    %v965 = vmul.f32 %v701, %v964
    %v966 = vrcp.pop %v891
    %v967 = vmul.f32 %v703, %v966
    %v968 = vrcp.pop %v895
    %v969 = vmul.f32 %v705, %v968
    %v970 = vrcp.pop %v899
    %v971 = vmul.f32 %v707, %v970
    %v972 = vrcp.pop %v903
    %v973 = vmul.f32 %v709, %v972
    %v974 = vrcp.pop %v907
    %v975 = vmul.f32 %v711, %v974
    %v976 = vrcp.pop %v911
    %v977 = vmul.f32 %v713, %v976
    %v978 = vrcp.pop %v915
    %v979 = vmul.f32 %v715, %v978
    %v980 = vrcp.pop %v919
    %v981 = vmul.f32 %v717, %v980
    %v982 = vrcp.pop %v923
    %v983 = vmul.f32 %v719, %v982
    %v984 = vrcp.pop %v927
    %v985 = vmul.f32 %v721, %v984
    %v986 = vrcp.pop %v931
    %v987 = vmul.f32 %v723, %v986
    %v988 = vrcp.pop %v935
    %v989 = vmul.f32 %v725, %v988
    %v990 = vrcp.pop %v939
    %v991 = vmul.f32 %v727, %v990
    %v992 = vrcp.pop %v943
    %v993 = vmul.f32 %v729, %v992
    %v994 = vrcp.pop %v947
    %v995 = vmul.f32 %v731, %v994
    %997 = vset.pattern.permute.xlu0 0
    %998 = vperm.xlu0 %997, %v965
    %v999 = vpop.permute.xlu0 %998
    %1002 = vset.pattern.permute.xlu0 0
    %1003 = vperm.xlu0 %1002, %v967
    %v1004 = vpop.permute.xlu0 %1003
    %1007 = vset.pattern.permute.xlu0 0
    %1008 = vperm.xlu0 %1007, %v969
    %v1009 = vpop.permute.xlu0 %1008
    %1012 = vset.pattern.permute.xlu0 0
    %1013 = vperm.xlu0 %1012, %v971
    %v1014 = vpop.permute.xlu0 %1013
    %1017 = vset.pattern.permute.xlu0 0
    %1018 = vperm.xlu0 %1017, %v973
    %v1019 = vpop.permute.xlu0 %1018
    %1022 = vset.pattern.permute.xlu0 0
    %1023 = vperm.xlu0 %1022, %v975
    %v1024 = vpop.permute.xlu0 %1023
    %1027 = vset.pattern.permute.xlu0 0
    %1028 = vperm.xlu0 %1027, %v977
    %v1029 = vpop.permute.xlu0 %1028
    %1032 = vset.pattern.permute.xlu0 0
    %1033 = vperm.xlu0 %1032, %v979
    %v1034 = vpop.permute.xlu0 %1033
    %1037 = vset.pattern.permute.xlu0 0
    %1038 = vperm.xlu0 %1037, %v981
    %v1039 = vpop.permute.xlu0 %1038
    %1042 = vset.pattern.permute.xlu0 0
    %1043 = vperm.xlu0 %1042, %v983
    %v1044 = vpop.permute.xlu0 %1043
    %1047 = vset.pattern.permute.xlu0 0
    %1048 = vperm.xlu0 %1047, %v985
    %v1049 = vpop.permute.xlu0 %1048
    %1052 = vset.pattern.permute.xlu0 0
    %1053 = vperm.xlu0 %1052, %v987
    %v1054 = vpop.permute.xlu0 %1053
    %1057 = vset.pattern.permute.xlu0 0
    %1058 = vperm.xlu0 %1057, %v989
    %v1059 = vpop.permute.xlu0 %1058
    %1062 = vset.pattern.permute.xlu0 0
    %1063 = vperm.xlu0 %1062, %v991
    %v1064 = vpop.permute.xlu0 %1063
    %1067 = vset.pattern.permute.xlu0 0
    %1068 = vperm.xlu0 %1067, %v993
    %v1069 = vpop.permute.xlu0 %1068
    %1072 = vset.pattern.permute.xlu0 0
    %1073 = vperm.xlu0 %1072, %v995
    %v1074 = vpop.permute.xlu0 %1073
    %v1076 = vmul.f32 %v999, %v60
    %v1077 = vmul.f32 %v1004, %v61
    %v1078 = vmul.f32 %v1009, %v62
    %v1079 = vmul.f32 %v1014, %v63
    %v1080 = vmul.f32 %v1019, %v64
    %v1081 = vmul.f32 %v1024, %v65
    %v1082 = vmul.f32 %v1029, %v66
    %v1083 = vmul.f32 %v1034, %v67
    %v1084 = vmul.f32 %v1039, %v68
    %v1085 = vmul.f32 %v1044, %v69
    %v1086 = vmul.f32 %v1049, %v70
    %v1087 = vmul.f32 %v1054, %v71
    %v1088 = vmul.f32 %v1059, %v72
    %v1089 = vmul.f32 %v1064, %v73
    %v1090 = vmul.f32 %v1069, %v74
    %v1091 = vmul.f32 %v1074, %v75
    %v1092 = vsel %vm87, %v1076, 0.0
    %v1093 = vrot.slane %v1092, 4
    %v1094 = vadd.f32 %v1092, %v1093
    %v1095 = vrot.slane %v1094, 2
    %v1096 = vadd.f32 %v1094, %v1095
    %v1097 = vrot.slane %v1096, 1
    %v1098 = vadd.f32 %v1096, %v1097
    %v1099 = vsel %vm87, %v1077, 0.0
    %v1100 = vrot.slane %v1099, 4
    %v1101 = vadd.f32 %v1099, %v1100
    %v1102 = vrot.slane %v1101, 2
    %v1103 = vadd.f32 %v1101, %v1102
    %v1104 = vrot.slane %v1103, 1
    %v1105 = vadd.f32 %v1103, %v1104
    %v1106 = vsel %vm87, %v1078, 0.0
    %v1107 = vrot.slane %v1106, 4
    %v1108 = vadd.f32 %v1106, %v1107
    %v1109 = vrot.slane %v1108, 2
    %v1110 = vadd.f32 %v1108, %v1109
    %v1111 = vrot.slane %v1110, 1
    %v1112 = vadd.f32 %v1110, %v1111
    %v1113 = vsel %vm87, %v1079, 0.0
    %v1114 = vrot.slane %v1113, 4
    %v1115 = vadd.f32 %v1113, %v1114
    %v1116 = vrot.slane %v1115, 2
    %v1117 = vadd.f32 %v1115, %v1116
    %v1118 = vrot.slane %v1117, 1
    %v1119 = vadd.f32 %v1117, %v1118
    %v1120 = vsel %vm87, %v1080, 0.0
    %v1121 = vrot.slane %v1120, 4
    %v1122 = vadd.f32 %v1120, %v1121
    %v1123 = vrot.slane %v1122, 2
    %v1124 = vadd.f32 %v1122, %v1123
    %v1125 = vrot.slane %v1124, 1
    %v1126 = vadd.f32 %v1124, %v1125
    %v1127 = vsel %vm87, %v1081, 0.0
    %v1128 = vrot.slane %v1127, 4
    %v1129 = vadd.f32 %v1127, %v1128
    %v1130 = vrot.slane %v1129, 2
    %v1131 = vadd.f32 %v1129, %v1130
    %v1132 = vrot.slane %v1131, 1
    %v1133 = vadd.f32 %v1131, %v1132
    %v1134 = vsel %vm87, %v1082, 0.0
    %v1135 = vrot.slane %v1134, 4
    %v1136 = vadd.f32 %v1134, %v1135
    %v1137 = vrot.slane %v1136, 2
    %v1138 = vadd.f32 %v1136, %v1137
    %v1139 = vrot.slane %v1138, 1
    %v1140 = vadd.f32 %v1138, %v1139
    %v1141 = vsel %vm87, %v1083, 0.0
    %v1142 = vrot.slane %v1141, 4
    %v1143 = vadd.f32 %v1141, %v1142
    %v1144 = vrot.slane %v1143, 2
    %v1145 = vadd.f32 %v1143, %v1144
    %v1146 = vrot.slane %v1145, 1
    %v1147 = vadd.f32 %v1145, %v1146
    %v1148 = vsel %vm87, %v1084, 0.0
    %v1149 = vrot.slane %v1148, 4
    %v1150 = vadd.f32 %v1148, %v1149
    %v1151 = vrot.slane %v1150, 2
    %v1152 = vadd.f32 %v1150, %v1151
    %v1153 = vrot.slane %v1152, 1
    %v1154 = vadd.f32 %v1152, %v1153
    %v1155 = vsel %vm87, %v1085, 0.0
    %v1156 = vrot.slane %v1155, 4
    %v1157 = vadd.f32 %v1155, %v1156
    %v1158 = vrot.slane %v1157, 2
    %v1159 = vadd.f32 %v1157, %v1158
    %v1160 = vrot.slane %v1159, 1
    %v1161 = vadd.f32 %v1159, %v1160
    %v1162 = vsel %vm87, %v1086, 0.0
    %v1163 = vrot.slane %v1162, 4
    %v1164 = vadd.f32 %v1162, %v1163
    %v1165 = vrot.slane %v1164, 2
    %v1166 = vadd.f32 %v1164, %v1165
    %v1167 = vrot.slane %v1166, 1
    %v1168 = vadd.f32 %v1166, %v1167
    %v1169 = vsel %vm87, %v1087, 0.0
    %v1170 = vrot.slane %v1169, 4
    %v1171 = vadd.f32 %v1169, %v1170
    %v1172 = vrot.slane %v1171, 2
    %v1173 = vadd.f32 %v1171, %v1172
    %v1174 = vrot.slane %v1173, 1
    %v1175 = vadd.f32 %v1173, %v1174
    %v1176 = vsel %vm87, %v1088, 0.0
    %v1177 = vrot.slane %v1176, 4
    %v1178 = vadd.f32 %v1176, %v1177
    %v1179 = vrot.slane %v1178, 2
    %v1180 = vadd.f32 %v1178, %v1179
    %v1181 = vrot.slane %v1180, 1
    %v1182 = vadd.f32 %v1180, %v1181
    %v1183 = vsel %vm87, %v1089, 0.0
    %v1184 = vrot.slane %v1183, 4
    %v1185 = vadd.f32 %v1183, %v1184
    %v1186 = vrot.slane %v1185, 2
    %v1187 = vadd.f32 %v1185, %v1186
    %v1188 = vrot.slane %v1187, 1
    %v1189 = vadd.f32 %v1187, %v1188
    %v1190 = vsel %vm87, %v1090, 0.0
    %v1191 = vrot.slane %v1190, 4
    %v1192 = vadd.f32 %v1190, %v1191
    %v1193 = vrot.slane %v1192, 2
    %v1194 = vadd.f32 %v1192, %v1193
    %v1195 = vrot.slane %v1194, 1
    %v1196 = vadd.f32 %v1194, %v1195
    %v1197 = vsel %vm87, %v1091, 0.0
    %v1198 = vrot.slane %v1197, 4
    %v1199 = vadd.f32 %v1197, %v1198
    %v1200 = vrot.slane %v1199, 2
    %v1201 = vadd.f32 %v1199, %v1200
    %v1202 = vrot.slane %v1201, 1
    %v1203 = vadd.f32 %v1201, %v1202
    %v1204 = vld [vmem:[%s5] sm:$0xff]
    %v1205 = vld [vmem:[%s5 + $0x8] sm:$0xff]
    %v1206 = vld [vmem:[%s5 + $0x10] sm:$0xff]
    %v1207 = vld [vmem:[%s5 + $0x18] sm:$0xff]
    %v1208 = vld [vmem:[%s6] sm:$0x1]
    %v1210 = vlaneseq
    %v1211 = vshrl.u32 %v1210, 7
    %v1212 = vsub.s32 0, %v1211
    %v1213 = vrot.slane %v1208, %v1212
    %v1231 = vsel %vm572, %v1105, %v1098
    %v1232 = vsel %vm574, %v1112, %v1231
    %v1233 = vsel %vm576, %v1119, %v1232
    %v1234 = vsel %vm578, %v1126, %v1233
    %v1235 = vsel %vm580, %v1133, %v1234
    %v1236 = vsel %vm582, %v1140, %v1235
    %v1237 = vsel %vm584, %v1147, %v1236
    %v1238 = vsel %vm572, %v1161, %v1154
    %v1239 = vsel %vm574, %v1168, %v1238
    %v1240 = vsel %vm576, %v1175, %v1239
    %v1241 = vsel %vm578, %v1182, %v1240
    %v1242 = vsel %vm580, %v1189, %v1241
    %v1243 = vsel %vm582, %v1196, %v1242
    %v1244 = vsel %vm584, %v1203, %v1243
    %v1245 = vsel %vm87, %v1237, 0
    %v1247 = vsel %vm87, %v1244, 0
    %1249 = vmatprep.subr.mxu0 0.0
    %1250 = vmatpush1.msra.mxu0 %v1204
    %1251 = vmatprep.subr.mxu0 0.0
    %1252 = vmatpush1.msra.mxu0 %v1205
    %1253 = vmatprep.subr.mxu0 0.0
    %1254 = vmatpush1.msra.mxu0 %v1206
    %1255 = vmatprep.subr.mxu0 0.0
    %1256 = vmatpush1.msra.mxu0 %v1207
    %1257 = vmatprep.subr.mxu0 0.0
    %1258 = vmatpush1.msra.mxu0 0.0
    %1259 = vmatprep.subr.mxu0 0.0
    %1260 = vmatpush1.msra.mxu0 0.0
    %1261 = vmatprep.subr.mxu0 0.0
    %1262 = vmatpush1.msra.mxu0 0.0
    %1263 = vmatprep.subr.mxu0 0.0
    %1264 = vmatpush1.msra.mxu0 0.0
    %1265 = vmatprep.subr.mxu0 0.0
    %1266 = vmatpush1.msra.mxu0 0.0
    %1267 = vmatprep.subr.mxu0 0.0
    %1268 = vmatpush1.msra.mxu0 0.0
    %1269 = vmatprep.subr.mxu0 0.0
    %1270 = vmatpush1.msra.mxu0 0.0
    %1271 = vmatprep.subr.mxu0 0.0
    %1272 = vmatpush1.msra.mxu0 0.0
    %1273 = vmatprep.subr.mxu0 0.0
    %1274 = vmatpush1.msra.mxu0 0.0
    %1275 = vmatprep.subr.mxu0 0.0
    %1276 = vmatpush1.msra.mxu0 0.0
    %1277 = vmatprep.subr.mxu0 0.0
    %1278 = vmatpush1.msra.mxu0 0.0
    %1279 = vmatprep.subr.mxu0 0.0
    %1280 = vmatpush1.msra.mxu0 0.0
    %1281 = vmatprep.subr.mxu0 0.0
    %1282 = vmatpush1.msra.mxu0 0.0
    %1283 = vmatprep.subr.mxu0 0.0
    %1284 = vmatpush1.msra.mxu0 0.0
    %1285 = vmatprep.subr.mxu0 0.0
    %1286 = vmatpush1.msra.mxu0 0.0
    %1287 = vmatprep.subr.mxu0 0.0
    %1288 = vmatpush1.msra.mxu0 0.0
    %1289 = vmatprep.subr.mxu0 0.0
    %1290 = vmatpush1.msra.mxu0 0.0
    %1291 = vmatprep.subr.mxu0 0.0
    %1292 = vmatpush1.msra.mxu0 0.0
    %1293 = vmatprep.subr.mxu0 0.0
    %1294 = vmatpush1.msra.mxu0 0.0
    %1295 = vmatprep.subr.mxu0 0.0
    %1296 = vmatpush1.msra.mxu0 0.0
    %1297 = vmatprep.subr.mxu0 0.0
    %1298 = vmatpush1.msra.mxu0 0.0
    %1299 = vmatprep.subr.mxu0 0.0
    %1300 = vmatpush1.msra.mxu0 0.0
    %1301 = vmatprep.subr.mxu0 0.0
    %1302 = vmatpush1.msra.mxu0 0.0
    %1303 = vmatprep.subr.mxu0 0.0
    %1304 = vmatpush1.msra.mxu0 0.0
    %1305 = vmatprep.subr.mxu0 0.0
    %1306 = vmatpush1.msra.mxu0 0.0
    %1307 = vmatprep.subr.mxu0 0.0
    %1308 = vmatpush1.msra.mxu0 0.0
    %1309 = vmatprep.subr.mxu0 0.0
    %1310 = vmatpush1.msra.mxu0 0.0
    %1311 = vmatprep.subr.mxu0 0.0
    %1312 = vmatpush1.msra.mxu0 0.0
    %1313 = vmatprep.mubr.f32.mxu0 0.0
    %1314 = vmatmul.mubr.f32.gmra.mrb[0].mxu0 %v1245
    %v1315 = vpop.f32.mrb[0].mxu0
    %v1316 = vadd.f32 %v1213, %v1315
    %v1317 = vpop.f32.mrb[0].mxu0
    %1318 = vmatprep.mubr.f32.mxu0 0.0
    %1319 = vmatmul.mubr.f32.gmra.mrb[0].mxu0 %v1247
    %v1320 = vpop.f32.mrb[0].mxu0
    %v1321 = vadd.f32 %v1213, %v1320
    %v1322 = vpop.f32.mrb[0].mxu0
    %1323 = vdwg.mxu0
    %v1324 = vsel %vm87, %v1316, 0.0
    %1325 = vadd.xlane.f32.xlu0 %v1324
    %v1326 = vpop.xlane.xlu0 %1325
    %v1327 = vsel %vm87, %v1321, 0.0
    %1328 = vadd.xlane.f32.xlu0 %v1327
    %v1329 = vpop.xlane.xlu0 %1328
    %v1330 = vrcp.pop 32.0
    %v1331 = vmul.f32 %v1326, %v1330
    %v1332 = vmul.f32 %v1329, %v1330
    %v1333 = vsub.f32 %v1316, %v1331
    %v1334 = vsub.f32 %v1321, %v1332
    %v1335 = vmul.f32 %v1333, %v1333
    %v1336 = vmul.f32 %v1334, %v1334
    %v1337 = vsel %vm87, %v1335, 0.0
    %1338 = vadd.xlane.f32.xlu0 %v1337
    %v1339 = vpop.xlane.xlu0 %1338
    %v1340 = vsel %vm87, %v1336, 0.0
    %1341 = vadd.xlane.f32.xlu0 %v1340
    %v1342 = vpop.xlane.xlu0 %1341
    %v1343 = vrcp.pop 31.0
    %v1344 = vmul.f32 %v1339, %v1343
    %v1345 = vmul.f32 %v1342, %v1343
    %v1346 = vld [vmem:[%s7] sm:$0x1]
    %v1348 = vlaneseq
    %v1349 = vshrl.u32 %v1348, 7
    %v1350 = vsub.s32 0, %v1349
    %v1351 = vrot.slane %v1346, %v1350
    %v1353 = vmul.f32 %v1351, %v1333
    %v1354 = vmul.f32 %v1351, %v1334
    %v1355 = vrsqrt.pop %v1344
    %v1356 = vmul.f32 %v1344, %v1355
    %vm1357 = vcmp.eq.f32.partialorder %v1344, inf
    %v1358 = vsel %vm1357, %v1344, %v1356
    %vm1359 = vcmp.eq.f32.partialorder %v1344, 0.0
    %v1360 = vand.u32 %v1344, 2147483648
    %v1361 = vsel %vm1359, %v1360, %v1358
    %v1362 = vrsqrt.pop %v1345
    %v1363 = vmul.f32 %v1345, %v1362
    %vm1364 = vcmp.eq.f32.partialorder %v1345, inf
    %v1365 = vsel %vm1364, %v1345, %v1363
    %vm1366 = vcmp.eq.f32.partialorder %v1345, 0.0
    %v1367 = vand.u32 %v1345, 2147483648
    %v1368 = vsel %vm1366, %v1367, %v1365
    %v1369 = vadd.f32 %v1361, 1e-06
    %v1370 = vadd.f32 %v1368, 1e-06
    %v1371 = vrcp.pop %v1369
    %v1372 = vmul.f32 %v1353, %v1371
    %v1373 = vrcp.pop %v1370
    %v1374 = vmul.f32 %v1354, %v1373
    %v1375 = vld [vmem:[%s8] sm:$0x1]
    %v1377 = vlaneseq
    %v1378 = vshrl.u32 %v1377, 7
    %v1379 = vsub.s32 0, %v1378
    %v1380 = vrot.slane %v1375, %v1379
    %v1382 = vadd.f32 %v1372, %v1380
    %v1383 = vadd.f32 %v1374, %v1380
    %v1384 = vld [vmem:[%s9] sm:$0xff]
    %v1385 = vld [vmem:[%s9 + $0x8] sm:$0xff]
    %v1386 = vld [vmem:[%s9 + $0x10] sm:$0xff]
    %v1387 = vld [vmem:[%s9 + $0x18] sm:$0xff]
    %v1389 = vsel %vm87, %v1382, 0
    %v1392 = vsel %vm87, %v1383, 0
    %1394 = vmatprep.subr.mxu0 0.0
    %1395 = vmatpush1.msra.mxu0 %v1384
    %1396 = vmatprep.subr.mxu0 0.0
    %1397 = vmatpush1.msra.mxu0 %v1385
    %1398 = vmatprep.subr.mxu0 0.0
    %1399 = vmatpush1.msra.mxu0 %v1386
    %1400 = vmatprep.subr.mxu0 0.0
    %1401 = vmatpush1.msra.mxu0 %v1387
    %1402 = vmatprep.subr.mxu0 0.0
    %1403 = vmatpush1.msra.mxu0 0.0
    %1404 = vmatprep.subr.mxu0 0.0
    %1405 = vmatpush1.msra.mxu0 0.0
    %1406 = vmatprep.subr.mxu0 0.0
    %1407 = vmatpush1.msra.mxu0 0.0
    %1408 = vmatprep.subr.mxu0 0.0
    %1409 = vmatpush1.msra.mxu0 0.0
    %1410 = vmatprep.subr.mxu0 0.0
    %1411 = vmatpush1.msra.mxu0 0.0
    %1412 = vmatprep.subr.mxu0 0.0
    %1413 = vmatpush1.msra.mxu0 0.0
    %1414 = vmatprep.subr.mxu0 0.0
    %1415 = vmatpush1.msra.mxu0 0.0
    %1416 = vmatprep.subr.mxu0 0.0
    %1417 = vmatpush1.msra.mxu0 0.0
    %1418 = vmatprep.subr.mxu0 0.0
    %1419 = vmatpush1.msra.mxu0 0.0
    %1420 = vmatprep.subr.mxu0 0.0
    %1421 = vmatpush1.msra.mxu0 0.0
    %1422 = vmatprep.subr.mxu0 0.0
    %1423 = vmatpush1.msra.mxu0 0.0
    %1424 = vmatprep.subr.mxu0 0.0
    %1425 = vmatpush1.msra.mxu0 0.0
    %1426 = vmatprep.subr.mxu0 0.0
    %1427 = vmatpush1.msra.mxu0 0.0
    %1428 = vmatprep.subr.mxu0 0.0
    %1429 = vmatpush1.msra.mxu0 0.0
    %1430 = vmatprep.subr.mxu0 0.0
    %1431 = vmatpush1.msra.mxu0 0.0
    %1432 = vmatprep.subr.mxu0 0.0
    %1433 = vmatpush1.msra.mxu0 0.0
    %1434 = vmatprep.subr.mxu0 0.0
    %1435 = vmatpush1.msra.mxu0 0.0
    %1436 = vmatprep.subr.mxu0 0.0
    %1437 = vmatpush1.msra.mxu0 0.0
    %1438 = vmatprep.subr.mxu0 0.0
    %1439 = vmatpush1.msra.mxu0 0.0
    %1440 = vmatprep.subr.mxu0 0.0
    %1441 = vmatpush1.msra.mxu0 0.0
    %1442 = vmatprep.subr.mxu0 0.0
    %1443 = vmatpush1.msra.mxu0 0.0
    %1444 = vmatprep.subr.mxu0 0.0
    %1445 = vmatpush1.msra.mxu0 0.0
    %1446 = vmatprep.subr.mxu0 0.0
    %1447 = vmatpush1.msra.mxu0 0.0
    %1448 = vmatprep.subr.mxu0 0.0
    %1449 = vmatpush1.msra.mxu0 0.0
    %1450 = vmatprep.subr.mxu0 0.0
    %1451 = vmatpush1.msra.mxu0 0.0
    %1452 = vmatprep.subr.mxu0 0.0
    %1453 = vmatpush1.msra.mxu0 0.0
    %1454 = vmatprep.subr.mxu0 0.0
    %1455 = vmatpush1.msra.mxu0 0.0
    %1456 = vmatprep.subr.mxu0 0.0
    %1457 = vmatpush1.msra.mxu0 0.0
    %1458 = vmatprep.mubr.f32.mxu0 0.0
    %1459 = vmatmul.mubr.f32.gmra.mrb[0].mxu0 %v1389
    %v1460 = vpop.f32.mrb[0].mxu0
    %v1461 = vadd.f32 0.0, %v1460
    %v1462 = vpop.f32.mrb[0].mxu0
    %1463 = vmatprep.mubr.f32.mxu0 0.0
    %1464 = vmatmul.mubr.f32.gmra.mrb[0].mxu0 %v1392
    %v1465 = vpop.f32.mrb[0].mxu0
    %v1466 = vadd.f32 0.0, %v1465
    %v1467 = vpop.f32.mrb[0].mxu0
    %1468 = vdwg.mxu0
    %v1469 = vmax.f32 %v1461, 0.0
    %v1470 = vmax.f32 %v1466, 0.0
    %v1471 = vld [vmem:[%s10] sm:$0xff]
    %v1472 = vld [vmem:[%s10 + $0x8] sm:$0xff]
    %v1473 = vld [vmem:[%s11] sm:$0x1]
    %v1475 = vlaneseq
    %v1476 = vshrl.u32 %v1475, 7
    %v1477 = vsub.s32 0, %v1476
    %v1478 = vrot.slane %v1473, %v1477
    %vm1480 = vcmask 130048
    %v1482 = vsel %vm1480, %v1469, 0
    %v1485 = vsel %vm1480, %v1470, 0
    %1487 = vmatprep.subr.mxu0 0.0
    %1488 = vmatpush1.msra.mxu0 %v1471
    %1489 = vmatprep.subr.mxu0 0.0
    %1490 = vmatpush1.msra.mxu0 %v1472
    %1491 = vmatprep.subr.mxu0 0.0
    %1492 = vmatpush1.msra.mxu0 0.0
    %1493 = vmatprep.subr.mxu0 0.0
    %1494 = vmatpush1.msra.mxu0 0.0
    %1495 = vmatprep.subr.mxu0 0.0
    %1496 = vmatpush1.msra.mxu0 0.0
    %1497 = vmatprep.subr.mxu0 0.0
    %1498 = vmatpush1.msra.mxu0 0.0
    %1499 = vmatprep.subr.mxu0 0.0
    %1500 = vmatpush1.msra.mxu0 0.0
    %1501 = vmatprep.subr.mxu0 0.0
    %1502 = vmatpush1.msra.mxu0 0.0
    %1503 = vmatprep.subr.mxu0 0.0
    %1504 = vmatpush1.msra.mxu0 0.0
    %1505 = vmatprep.subr.mxu0 0.0
    %1506 = vmatpush1.msra.mxu0 0.0
    %1507 = vmatprep.subr.mxu0 0.0
    %1508 = vmatpush1.msra.mxu0 0.0
    %1509 = vmatprep.subr.mxu0 0.0
    %1510 = vmatpush1.msra.mxu0 0.0
    %1511 = vmatprep.subr.mxu0 0.0
    %1512 = vmatpush1.msra.mxu0 0.0
    %1513 = vmatprep.subr.mxu0 0.0
    %1514 = vmatpush1.msra.mxu0 0.0
    %1515 = vmatprep.subr.mxu0 0.0
    %1516 = vmatpush1.msra.mxu0 0.0
    %1517 = vmatprep.subr.mxu0 0.0
    %1518 = vmatpush1.msra.mxu0 0.0
    %1519 = vmatprep.subr.mxu0 0.0
    %1520 = vmatpush1.msra.mxu0 0.0
    %1521 = vmatprep.subr.mxu0 0.0
    %1522 = vmatpush1.msra.mxu0 0.0
    %1523 = vmatprep.subr.mxu0 0.0
    %1524 = vmatpush1.msra.mxu0 0.0
    %1525 = vmatprep.subr.mxu0 0.0
    %1526 = vmatpush1.msra.mxu0 0.0
    %1527 = vmatprep.subr.mxu0 0.0
    %1528 = vmatpush1.msra.mxu0 0.0
    %1529 = vmatprep.subr.mxu0 0.0
    %1530 = vmatpush1.msra.mxu0 0.0
    %1531 = vmatprep.subr.mxu0 0.0
    %1532 = vmatpush1.msra.mxu0 0.0
    %1533 = vmatprep.subr.mxu0 0.0
    %1534 = vmatpush1.msra.mxu0 0.0
    %1535 = vmatprep.subr.mxu0 0.0
    %1536 = vmatpush1.msra.mxu0 0.0
    %1537 = vmatprep.subr.mxu0 0.0
    %1538 = vmatpush1.msra.mxu0 0.0
    %1539 = vmatprep.subr.mxu0 0.0
    %1540 = vmatpush1.msra.mxu0 0.0
    %1541 = vmatprep.subr.mxu0 0.0
    %1542 = vmatpush1.msra.mxu0 0.0
    %1543 = vmatprep.subr.mxu0 0.0
    %1544 = vmatpush1.msra.mxu0 0.0
    %1545 = vmatprep.subr.mxu0 0.0
    %1546 = vmatpush1.msra.mxu0 0.0
    %1547 = vmatprep.subr.mxu0 0.0
    %1548 = vmatpush1.msra.mxu0 0.0
    %1549 = vmatprep.subr.mxu0 0.0
    %1550 = vmatpush1.msra.mxu0 0.0
    %1551 = vmatprep.mubr.f32.mxu0 0.0
    %1552 = vmatmul.mubr.f32.gmra.mrb[0].mxu0 %v1482
    %v1553 = vpop.f32.mrb[0].mxu0
    %v1554 = vadd.f32 %v1478, %v1553
    %v1555 = vpop.f32.mrb[0].mxu0
    %1556 = vmatprep.mubr.f32.mxu0 0.0
    %1557 = vmatmul.mubr.f32.gmra.mrb[0].mxu0 %v1485
    %v1558 = vpop.f32.mrb[0].mxu0
    %v1559 = vadd.f32 %v1478, %v1558
    %v1560 = vpop.f32.mrb[0].mxu0
    %1561 = vdwg.mxu0
    %v1562 = vld [vmem:[%s12] sm:$0xff]
    %v1563 = vld [vmem:[%s12 + $0x8] sm:$0xff]
    %v1564 = vadd.f32 %v1554, %v1562
    %v1565 = vadd.f32 %v1559, %v1563
    %v1566 = vmul.f32 %v1564, 2.0
    %v1567 = vmul.f32 %v1565, 2.0
    %vm1568 = vcmask 31744
    %v1569 = vsel %vm1568, %v1566, -inf
    %1570 = vmax.xlane.f32.xlu0 %v1569
    %v1571 = vpop.xlane.xlu0 %1570
    %v1572 = vsel %vm1568, %v1567, -inf
    %1573 = vmax.xlane.f32.xlu0 %v1572
    %v1574 = vpop.xlane.xlu0 %1573
    %v1575 = vsub.f32 %v1566, %v1571
    %v1576 = vsub.f32 %v1567, %v1574
    %v1577 = vmul.f32 %v1575, 1.442695
    %v1578 = vpow.pop %v1577
    %v1579 = vmul.f32 %v1576, 1.442695
    %v1580 = vpow.pop %v1579
    %v1581 = vsel %vm1568, %v1578, 0.0
    %1582 = vadd.xlane.f32.xlu0 %v1581
    %v1583 = vpop.xlane.xlu0 %1582
    %v1584 = vsel %vm1568, %v1580, 0.0
    %1585 = vadd.xlane.f32.xlu0 %v1584
    %v1586 = vpop.xlane.xlu0 %1585
    %v1587 = vrcp.pop %v1583
    %v1588 = vmul.f32 %v1578, %v1587
    %v1589 = vrcp.pop %v1586
    %v1590 = vmul.f32 %v1580, %v1589
    %1591 = vst.msk [vmem:[%s13] sm:$0xff] %vm1568, %v1588
    %1592 = vst.msk [vmem:[%s13 + $0x8] sm:$0xff] %vm1568, %v1590
    // Predicated region
    $region58: #{tpu_custom_call.1} parent=1 // pred_check
      _
    $region59: #{tpu_custom_call.1} parent=1 // pred_check_branch
      %1594 = sbr.rel (0) target = $region61
    $region60: #{tpu_custom_call.1} parent=1 // pred_region
      _
    $region61: #{tpu_custom_call.1} parent=1 // pred_fallthru
      _
    // Predicated region
    $region62: #{tpu_custom_call.1} parent=1 // pred_check
      _
    $region63: #{tpu_custom_call.1} parent=1 // pred_check_branch
      %1596 = sbr.rel (0) target = $region65
    $region64: #{tpu_custom_call.1} parent=1 // pred_region
      _
    $region65: #{tpu_custom_call.1} parent=1 // pred_fallthru
      _
    %1597 = vsyncpa [#allocation4], 1

</llo_original>
